<compile_context>
chip_gen: v7x
topology: tpu7x:2x2x1
jax: 0.10.0
libtpu: 0.0.40
codegen_flags: <defaults>
</compile_context>

<pallas_src>
import functools

import jax
import jax.numpy as jnp
from jax.experimental import pallas as pl
from jax.experimental.pallas import tpu as pltpu

_LANE = 128
_DOT_DTYPE = jnp.bfloat16   # MXU-native input dtype on v5e/v6e/v7x; f32 accumulate.


# ----------------------------------------------------------------------------
# helpers
# ----------------------------------------------------------------------------
def _round_up(n, m):
    return ((n + m - 1) // m) * m


def _choose_tile(n_padded, max_tile=1024):
    """Largest multiple of 128 that divides n_padded and is <= max_tile."""
    t = min(max_tile, n_padded)
    t = (t // _LANE) * _LANE
    while t > _LANE:
        if n_padded % t == 0:
            return t
        t -= _LANE
    return _LANE


def _pad_n(x, n_pad):
    n = x.shape[-1]
    if n == n_pad:
        return x
    return jnp.pad(x, ((0, 0), (0, n_pad - n)))


def _apply_act(y, act):
    if act == "gelu":
        # TODO(synk): PyTorch F.gelu default is the exact erf form; the tanh
        # approximation is used here for robust Mosaic lowering (~1e-3 diff).
        return jax.nn.gelu(y, approximate=True)
    if act == "sigmoid":
        return jax.nn.sigmoid(y)
    return y


# ----------------------------------------------------------------------------
# Pallas kernels (channels-first: x (Cin, tile_n), w (Cout, Cin), out (Cout, tile_n))
# ----------------------------------------------------------------------------
def _matmul_act_kernel(x_ref, w_ref, b_ref, o_ref, *, act):
    """out = act(w @ x + b) on one lane-dense tile."""
    y = jnp.dot(w_ref[...].astype(_DOT_DTYPE), x_ref[...].astype(_DOT_DTYPE),
                preferred_element_type=jnp.float32)
    y = y + b_ref[...]
    o_ref[...] = _apply_act(y, act).astype(o_ref.dtype)


def pallas_linear_cf(w, x, b, act="none", max_tile=1024):
    """Pointwise linear over channels: act(w @ x + b), x: (Cin, N) -> (Cout, N)."""
    Cout, Cin = w.shape
    N = x.shape[-1]
    Np = _round_up(N, _LANE)
    tile = _choose_tile(Np, max_tile)
    xp = _pad_n(x, Np)
    b2 = b.reshape(Cout, 1)
    out = pl.pallas_call(
        functools.partial(_matmul_act_kernel, act=act),
        out_shape=jax.ShapeDtypeStruct((Cout, Np), jnp.float32),
        grid=(Np // tile,),
        in_specs=[
            pl.BlockSpec((Cin, tile), lambda i: (0, i)),
            pl.BlockSpec((Cout, Cin), lambda i: (0, 0)),
            pl.BlockSpec((Cout, 1), lambda i: (0, 0)),
        ],
        out_specs=pl.BlockSpec((Cout, tile), lambda i: (0, i)),
        compiler_params=pltpu.CompilerParams(dimension_semantics=("parallel",)),
    )(xp, w, b2)
    return out[:, :N] if Np != N else out


def _fno_block_kernel(x_ref, w_ref, b_ref, s_ref, o_ref, *, act):
    """One FNO block tail: out = act(spectral + w_pointwise @ x + b)."""
    y = jnp.dot(w_ref[...].astype(_DOT_DTYPE), x_ref[...].astype(_DOT_DTYPE),
                preferred_element_type=jnp.float32)
    y = y + b_ref[...] + s_ref[...]
    o_ref[...] = _apply_act(y, act).astype(o_ref.dtype)


def pallas_fno_block_cf(w, x, b, spec, act="gelu", max_tile=1024):
    Cout, Cin = w.shape
    N = x.shape[-1]
    Np = _round_up(N, _LANE)
    tile = _choose_tile(Np, max_tile)
    xp = _pad_n(x, Np)
    sp = _pad_n(spec, Np)
    b2 = b.reshape(Cout, 1)
    out = pl.pallas_call(
        functools.partial(_fno_block_kernel, act=act),
        out_shape=jax.ShapeDtypeStruct((Cout, Np), jnp.float32),
        grid=(Np // tile,),
        in_specs=[
            pl.BlockSpec((Cin, tile), lambda i: (0, i)),
            pl.BlockSpec((Cout, Cin), lambda i: (0, 0)),
            pl.BlockSpec((Cout, 1), lambda i: (0, 0)),
            pl.BlockSpec((Cout, tile), lambda i: (0, i)),
        ],
        out_specs=pl.BlockSpec((Cout, tile), lambda i: (0, i)),
        compiler_params=pltpu.CompilerParams(dimension_semantics=("parallel",)),
    )(xp, w, b2, sp)
    return out[:, :N] if Np != N else out


def _proj_tail_kernel(x_ref, w1_ref, b1_ref, w2_ref, b2_ref, o_ref, *, final_act):
    """Fused fc1 -> gelu -> fc2 (-> sigmoid); fc1 intermediate stays in VMEM."""
    x = x_ref[...]
    h = jnp.dot(w1_ref[...].astype(_DOT_DTYPE), x.astype(_DOT_DTYPE),
                preferred_element_type=jnp.float32) + b1_ref[...]
    h = _apply_act(h, "gelu")
    y = jnp.dot(w2_ref[...].astype(_DOT_DTYPE), h.astype(_DOT_DTYPE),
                preferred_element_type=jnp.float32) + b2_ref[...]
    o_ref[...] = _apply_act(y, final_act).astype(o_ref.dtype)


def pallas_proj_tail_cf(w1, b1, w2, b2, x, final_act="none", max_tile=1024):
    hidden, width = w1.shape
    out_ch = w2.shape[0]
    N = x.shape[-1]
    Np = _round_up(N, _LANE)
    tile = _choose_tile(Np, max_tile)
    xp = _pad_n(x, Np)
    b1c = b1.reshape(hidden, 1)
    b2c = b2.reshape(out_ch, 1)
    out = pl.pallas_call(
        functools.partial(_proj_tail_kernel, final_act=final_act),
        out_shape=jax.ShapeDtypeStruct((out_ch, Np), jnp.float32),
        grid=(Np // tile,),
        in_specs=[
            pl.BlockSpec((width, tile), lambda i: (0, i)),
            pl.BlockSpec((hidden, width), lambda i: (0, 0)),
            pl.BlockSpec((hidden, 1), lambda i: (0, 0)),
            pl.BlockSpec((out_ch, hidden), lambda i: (0, 0)),
            pl.BlockSpec((out_ch, 1), lambda i: (0, 0)),
        ],
        out_specs=pl.BlockSpec((out_ch, tile), lambda i: (0, i)),
        compiler_params=pltpu.CompilerParams(dimension_semantics=("parallel",)),
    )(xp, w1, b1c, w2, b2c)
    return out[:, :N] if Np != N else out


# ----------------------------------------------------------------------------
# Spectral convolution (FFT stays in plain JAX; it is glue around the kernels)
# ----------------------------------------------------------------------------
# TODO(synk): rfft2/irfft2 have no Pallas/Mosaic primitive; FFT and the tiny
# per-mode complex channel mixing are kept in plain JAX.
def spectral_conv2d(x, w1r, w1i, w2r, w2i, m1, m2):
    """x: (B, Cin, H, W) real -> (B, Cout, H, W) real (PyTorch NCHW semantics)."""
    B, Cin, H, W = x.shape
    Wr = W // 2 + 1
    assert 2 * m1 <= H and m2 <= Wr, (m1, m2, H, W)
    x_ft = jnp.fft.rfft2(x, axes=(2, 3))                       # (B, Cin, H, Wr)
    w1 = w1r + 1j * w1i                                        # (Cin, Cout, m1, m2)
    w2 = w2r + 1j * w2i
    Cout = w1.shape[1]
    # one batched contraction over both retained mode blocks (matches bixy,ioxy->boxy)
    x_modes = jnp.stack([x_ft[:, :, :m1, :m2], x_ft[:, :, H - m1:, :m2]], axis=0)
    w = jnp.stack([w1, w2], axis=0)                            # (2, Cin, Cout, m1, m2)
    mixed = jnp.einsum("sbixy,sioxy->sboxy", x_modes, w)       # (2, B, Cout, m1, m2)
    # assemble out_ft via concat + pad instead of scatter into zeros
    zeros_mid = jnp.zeros((B, Cout, H - 2 * m1, m2), dtype=mixed.dtype)
    col = jnp.concatenate([mixed[0], zeros_mid, mixed[1]], axis=2)   # (B, Cout, H, m2)
    out_ft = jnp.pad(col, ((0, 0), (0, 0), (0, 0), (0, Wr - m2)))
    y = jnp.fft.irfft2(out_ft, s=(H, W), axes=(2, 3))
    return y.astype(jnp.float32)


# ----------------------------------------------------------------------------
# FNO2d_Lattice : lift -> numLayers * (spectral + 1x1 conv + gelu) -> fused tail
# ----------------------------------------------------------------------------
def _uniform(key, shape, scale):
    return jax.random.uniform(key, shape, jnp.float32, -scale, scale)


def init_fno_params(key, num_layers, m1, m2, width, out_ch, in_ch=2, hidden=128):
    params = {}
    keys = jax.random.split(key, 5 * num_layers + 3)
    ki = iter(keys)
    params["fc0_w"] = _uniform(next(ki), (width, in_ch), 1.0 / jnp.sqrt(in_ch))
    params["fc0_b"] = jnp.zeros((width,), jnp.float32)
    spec_scale = 1.0 / (width * width)
    for l in range(num_layers):
        params[f"w1r_{l}"] = _uniform(next(ki), (width, width, m1, m2), spec_scale)
        params[f"w1i_{l}"] = _uniform(next(ki), (width, width, m1, m2), spec_scale)
        params[f"w2r_{l}"] = _uniform(next(ki), (width, width, m1, m2), spec_scale)
        params[f"w2i_{l}"] = _uniform(next(ki), (width, width, m1, m2), spec_scale)
        params[f"pw_w_{l}"] = _uniform(next(ki), (width, width), 1.0 / jnp.sqrt(width))
        params[f"pw_b_{l}"] = jnp.zeros((width,), jnp.float32)
    params["fc1_w"] = _uniform(next(ki), (hidden, width), 1.0 / jnp.sqrt(width))
    params["fc1_b"] = jnp.zeros((hidden,), jnp.float32)
    params["fc2_w"] = _uniform(next(ki), (out_ch, hidden), 1.0 / jnp.sqrt(hidden))
    params["fc2_b"] = jnp.zeros((out_ch,), jnp.float32)
    return params


def fno2d_forward(params, x_cf, shape_bhw, num_layers, m1, m2, width, final_act):
    """x_cf: (2, N) channels-first with N = B*H*W row-major -> (B, H, W, out_ch)."""
    B, H, W = shape_bhw
    N = B * H * W
    h = pallas_linear_cf(params["fc0_w"], x_cf, params["fc0_b"])       # (width, N)
    for l in range(num_layers):
        h_sp = h.reshape(width, B, H, W).transpose(1, 0, 2, 3)         # (B, width, H, W)
        spec = spectral_conv2d(
            h_sp,
            params[f"w1r_{l}"], params[f"w1i_{l}"],
            params[f"w2r_{l}"], params[f"w2i_{l}"],
            m1, m2,
        ).transpose(1, 0, 2, 3).reshape(width, N)
        act = "gelu" if l < num_layers - 1 else "none"
        h = pallas_fno_block_cf(params[f"pw_w_{l}"], h, params[f"pw_b_{l}"], spec, act=act)
    out = pallas_proj_tail_cf(params["fc1_w"], params["fc1_b"],
                              params["fc2_w"], params["fc2_b"], h, final_act=final_act)
    out_ch = out.shape[0]
    return out.reshape(out_ch, B, H, W).transpose(1, 2, 3, 0)          # (B, H, W, out_ch)


# ----------------------------------------------------------------------------
# FNO_Net_branch
# ----------------------------------------------------------------------------
class FNONetBranchPallas:
    def __init__(self, numLayers, numModex, numModey, numNeuronsPerLyr,
                 nelx, nely, symXAxis, symYAxis, searchMode, simplexDim,
                 latentDim, key):
        self.nelx = nelx
        self.nely = nely
        self.inputDim = 2
        if searchMode == "simplex":
            self.outputDim = 2 + simplexDim
        elif searchMode == "cubic":
            self.outputDim = 1 + latentDim
        self.searchMode = searchMode
        self.simplexDim = simplexDim
        self.latentDim = latentDim
        self.symXAxis = symXAxis
        self.symYAxis = symYAxis
        self.numLayers = numLayers
        self.numModex = numModex
        self.numModey = numModey
        k1, k2 = jax.random.split(key)
        # density model contributes 1 channel, lattice model the rest.
        lattice_out = self.outputDim - 1
        self.lattice_params = init_fno_params(k1, numLayers, numModex, numModey,
                                              10, lattice_out)
        self.density_params = init_fno_params(k2, numLayers, 2, 1, 5, 1)

    def forward(self, x, resolution, fixedIdx=None):
        nelx, nely = self.nelx, self.nely
        if self.symYAxis:
            xv = 0.5 * nelx + jnp.abs(x[:, 0] - 0.5 * nelx)
        else:
            xv = x[:, 0]
        if self.symXAxis:
            yv = 0.5 * nely + jnp.abs(x[:, 1] - 0.5 * nely)
        else:
            yv = x[:, 1]
        xy = jnp.stack((xv, yv), axis=1)  # == transpose(stack((xv,yv)),0,1)
        H = nelx * resolution
        W = nely * resolution
        x_cf = xy.astype(jnp.float32).T                # (2, N), N = H*W (B = 1)
        shape_bhw = (1, H, W)

        # For 'cubic' the final sigmoid is elementwise, so it commutes with the
        # concat and the mirroring below -> fuse it into the projection tail.
        final_act = "sigmoid" if self.searchMode == "cubic" else "none"

        density = fno2d_forward(self.density_params, x_cf, shape_bhw,
                                self.numLayers, 2, 1, 5, final_act)
        lattice = fno2d_forward(self.lattice_params, x_cf, shape_bhw,
                                self.numLayers, self.numModex, self.numModey, 10,
                                final_act)
        out = jnp.concatenate((density, lattice), axis=-1)  # (1, H, W, outputDim)

        # symmetry mirroring (functional .at[] instead of torch in-place writes);
        # the original symYAxis branch references an undefined y_mid_idx (bug) --
        # we implement the clearly intended x_mid_idx mirroring.
        if self.symYAxis:
            x_mid_idx = nelx // 2
            back = jnp.flip(out[:, :x_mid_idx, :, :], axis=1)
            start = x_mid_idx if nelx % 2 == 0 else x_mid_idx + 1
            out = out.at[:, start:, :, :].set(back)
        if self.symXAxis:
            y_mid_idx = nely // 2
            back = jnp.flip(out[:, :, :y_mid_idx, :], axis=2)
            start = y_mid_idx if nely % 2 == 0 else y_mid_idx + 1
            out = out.at[:, :, start:, :].set(back)

        out = out.reshape(-1, self.outputDim)
        if self.searchMode == "simplex":
            rho = jax.nn.sigmoid(out[:, 0])
            rho = (1 - fixedIdx) * rho + fixedIdx * (rho + jnp.abs(1 - rho))
            t = jax.nn.softmax(out[:, 1:], axis=1)
        else:  # 'cubic': sigmoid already fused into the Pallas projection tail
            rho = out[:, 0]
            t = out[:, 1:]
        return rho, t


# ----------------------------------------------------------------------------
if __name__ == "__main__":
    nelx, nely = 8, 8
    resolution = 2
    numLayers = 2
    numModex, numModey = 4, 4
    latentDim = 3
    simplexDim = 3

    model = FNONetBranchPallas(
        numLayers, numModex, numModey, 20, nelx, nely,
        symXAxis=False, symYAxis=False, searchMode="cubic",
        simplexDim=simplexDim, latentDim=latentDim,
        key=jax.random.PRNGKey(0),
    )

    H, W = nelx * resolution, nely * resolution
    # deterministic element-center coordinate grid, shape (H*W, 2)
    xs = (jnp.arange(H, dtype=jnp.float32) + 0.5) / resolution
    ys = (jnp.arange(W, dtype=jnp.float32) + 0.5) / resolution
    gx, gy = jnp.meshgrid(xs, ys, indexing="ij")
    x = jnp.stack([gx.ravel(), gy.ravel()], axis=1)  # (256, 2)

    fwd = jax.jit(lambda xin: model.forward(xin, resolution))
    rho, t = fwd(x)
    (rho, t) = jax.block_until_ready((rho, t))
    assert rho.shape == (H * W,)
    assert t.shape == (H * W, latentDim)
    assert bool(jnp.all(jnp.isfinite(rho))) and bool(jnp.all(jnp.isfinite(t)))
    assert bool(jnp.all(rho >= 0) & jnp.all(rho <= 1))  # sigmoid fused in tail
    print("KERNEL_OK")
</pallas_src>

<mosaic_0001>
module attributes {stable_mosaic.version = 11 : i64} {
  func.func @_matmul_act_kernel(%arg0: i32, %arg1: memref<2x256xf32, #tpu.memory_space<vmem>>, %arg2: memref<10x2xf32, #tpu.memory_space<vmem>>, %arg3: memref<10x1xf32, #tpu.memory_space<vmem>>, %arg4: memref<10x256xf32, #tpu.memory_space<vmem>>) attributes {dimension_semantics = [#tpu.dimension_semantics<parallel>], iteration_bounds = array<i64: 1>, scalar_prefetch = 0 : i64, scratch_operands = 0 : i64, tpu.core_type = #tpu.core_type<tc>, window_params = [{transform_indices = @transform_0, window_bounds = array<i64: 2, 256>}, {pipeline_mode = #tpu.pipeline_mode<synchronous>, transform_indices = @transform_1, window_bounds = array<i64: 10, 2>}, {pipeline_mode = #tpu.pipeline_mode<synchronous>, transform_indices = @transform_2, window_bounds = array<i64: 10, 1>}, {transform_indices = @transform_3, window_bounds = array<i64: 10, 256>}]} {
    %c0 = arith.constant 0 : index
    %c0_0 = arith.constant 0 : index
    %0 = vector.load %arg2[%c0, %c0_0] : memref<10x2xf32, #tpu.memory_space<vmem>>, vector<10x2xf32>
    %1 = arith.truncf %0 : vector<10x2xf32> to vector<10x2xbf16>
    %c0_1 = arith.constant 0 : index
    %c0_2 = arith.constant 0 : index
    %2 = vector.load %arg1[%c0_1, %c0_2] : memref<2x256xf32, #tpu.memory_space<vmem>>, vector<2x256xf32>
    %3 = arith.truncf %2 : vector<2x256xf32> to vector<2x256xbf16>
    %cst = arith.constant dense<0.000000e+00> : vector<10x256xf32>
    %4 = tpu.matmul %1, %3, %cst {dimension_numbers = #tpu.dot_dimension_numbers<[1], [0], [0], [1], [0, 0, 1, 1], [], []>} : vector<10x2xbf16>, vector<2x256xbf16>, vector<10x256xf32> -> vector<10x256xf32>
    %c0_3 = arith.constant 0 : index
    %c0_4 = arith.constant 0 : index
    %5 = vector.load %arg3[%c0_3, %c0_4] : memref<10x1xf32, #tpu.memory_space<vmem>>, vector<10x1xf32>
    %6 = vector.broadcast %5 : vector<10x1xf32> to vector<10x256xf32>
    %7 = arith.addf %4, %6 : vector<10x256xf32>
    %c0_5 = arith.constant 0 : index
    %c0_6 = arith.constant 0 : index
    %8 = vector.load %arg4[%c0_5, %c0_6] : memref<10x256xf32, #tpu.memory_space<vmem>>, vector<10x256xf32>
    tpu.vector_store %arg4[%c0_5, %c0_6], %7 {strides = array<i32>} : memref<10x256xf32, #tpu.memory_space<vmem>>, vector<10x256xf32>,
    return
  }
  func.func @transform_0(%arg0: i32) -> (i32, i32) {
    %c0_i32 = arith.constant 0 : i32
    %c0_i32_0 = arith.constant 0 : i32
    return %c0_i32, %arg0 : i32, i32
  }
  func.func @transform_1(%arg0: i32) -> (i32, i32) {
    %c0_i32 = arith.constant 0 : i32
    %c0_i32_0 = arith.constant 0 : i32
    %c0_i32_1 = arith.constant 0 : i32
    return %c0_i32, %c0_i32_0 : i32, i32
  }
  func.func @transform_2(%arg0: i32) -> (i32, i32) {
    %c0_i32 = arith.constant 0 : i32
    %c0_i32_0 = arith.constant 0 : i32
    %c0_i32_1 = arith.constant 0 : i32
    return %c0_i32, %c0_i32_0 : i32, i32
  }
  func.func @transform_3(%arg0: i32) -> (i32, i32) {
    %c0_i32 = arith.constant 0 : i32
    %c0_i32_0 = arith.constant 0 : i32
    return %c0_i32, %arg0 : i32, i32
  }
}

module attributes {stable_mosaic.version = 11 : i64} {
  func.func @_fno_block_kernel(%arg0: i32, %arg1: memref<10x256xf32, #tpu.memory_space<vmem>>, %arg2: memref<10x10xf32, #tpu.memory_space<vmem>>, %arg3: memref<10x1xf32, #tpu.memory_space<vmem>>, %arg4: memref<10x256xf32, #tpu.memory_space<vmem>>, %arg5: memref<10x256xf32, #tpu.memory_space<vmem>>) attributes {dimension_semantics = [#tpu.dimension_semantics<parallel>], iteration_bounds = array<i64: 1>, scalar_prefetch = 0 : i64, scratch_operands = 0 : i64, tpu.core_type = #tpu.core_type<tc>, window_params = [{transform_indices = @transform_0, window_bounds = array<i64: 10, 256>}, {pipeline_mode = #tpu.pipeline_mode<synchronous>, transform_indices = @transform_1, window_bounds = array<i64: 10, 10>}, {pipeline_mode = #tpu.pipeline_mode<synchronous>, transform_indices = @transform_2, window_bounds = array<i64: 10, 1>}, {transform_indices = @transform_3, window_bounds = array<i64: 10, 256>}, {transform_indices = @transform_4, window_bounds = array<i64: 10, 256>}]} {
    %c0 = arith.constant 0 : index
    %c0_0 = arith.constant 0 : index
    %0 = vector.load %arg2[%c0, %c0_0] : memref<10x10xf32, #tpu.memory_space<vmem>>, vector<10x10xf32>
    %1 = arith.truncf %0 : vector<10x10xf32> to vector<10x10xbf16>
    %c0_1 = arith.constant 0 : index
    %c0_2 = arith.constant 0 : index
    %2 = vector.load %arg1[%c0_1, %c0_2] : memref<10x256xf32, #tpu.memory_space<vmem>>, vector<10x256xf32>
    %3 = arith.truncf %2 : vector<10x256xf32> to vector<10x256xbf16>
    %cst = arith.constant dense<0.000000e+00> : vector<10x256xf32>
    %4 = tpu.matmul %1, %3, %cst {dimension_numbers = #tpu.dot_dimension_numbers<[1], [0], [0], [1], [0, 0, 1, 1], [], []>} : vector<10x10xbf16>, vector<10x256xbf16>, vector<10x256xf32> -> vector<10x256xf32>
    %c0_3 = arith.constant 0 : index
    %c0_4 = arith.constant 0 : index
    %5 = vector.load %arg3[%c0_3, %c0_4] : memref<10x1xf32, #tpu.memory_space<vmem>>, vector<10x1xf32>
    %6 = vector.broadcast %5 : vector<10x1xf32> to vector<10x256xf32>
    %7 = arith.addf %4, %6 : vector<10x256xf32>
    %c0_5 = arith.constant 0 : index
    %c0_6 = arith.constant 0 : index
    %8 = vector.load %arg4[%c0_5, %c0_6] : memref<10x256xf32, #tpu.memory_space<vmem>>, vector<10x256xf32>
    %9 = arith.addf %7, %8 : vector<10x256xf32>
    %c0_7 = arith.constant 0 : index
    %c0_8 = arith.constant 0 : index
    %10 = vector.load %arg5[%c0_7, %c0_8] : memref<10x256xf32, #tpu.memory_space<vmem>>, vector<10x256xf32>
    tpu.vector_store %arg5[%c0_7, %c0_8], %9 {strides = array<i32>} : memref<10x256xf32, #tpu.memory_space<vmem>>, vector<10x256xf32>,
    return
  }
  func.func @transform_0(%arg0: i32) -> (i32, i32) {
    %c0_i32 = arith.constant 0 : i32
    %c0_i32_0 = arith.constant 0 : i32
    return %c0_i32, %arg0 : i32, i32
  }
  func.func @transform_1(%arg0: i32) -> (i32, i32) {
    %c0_i32 = arith.constant 0 : i32
    %c0_i32_0 = arith.constant 0 : i32
    %c0_i32_1 = arith.constant 0 : i32
    return %c0_i32, %c0_i32_0 : i32, i32
  }
  func.func @transform_2(%arg0: i32) -> (i32, i32) {
    %c0_i32 = arith.constant 0 : i32
    %c0_i32_0 = arith.constant 0 : i32
    %c0_i32_1 = arith.constant 0 : i32
    return %c0_i32, %c0_i32_0 : i32, i32
  }
  func.func @transform_3(%arg0: i32) -> (i32, i32) {
    %c0_i32 = arith.constant 0 : i32
    %c0_i32_0 = arith.constant 0 : i32
    return %c0_i32, %arg0 : i32, i32
  }
  func.func @transform_4(%arg0: i32) -> (i32, i32) {
    %c0_i32 = arith.constant 0 : i32
    %c0_i32_0 = arith.constant 0 : i32
    return %c0_i32, %arg0 : i32, i32
  }
}

module attributes {stable_mosaic.version = 11 : i64} {
  func.func @_fno_block_kernel(%arg0: i32, %arg1: memref<10x256xf32, #tpu.memory_space<vmem>>, %arg2: memref<10x10xf32, #tpu.memory_space<vmem>>, %arg3: memref<10x1xf32, #tpu.memory_space<vmem>>, %arg4: memref<10x256xf32, #tpu.memory_space<vmem>>, %arg5: memref<10x256xf32, #tpu.memory_space<vmem>>) attributes {dimension_semantics = [#tpu.dimension_semantics<parallel>], iteration_bounds = array<i64: 1>, scalar_prefetch = 0 : i64, scratch_operands = 0 : i64, tpu.core_type = #tpu.core_type<tc>, window_params = [{transform_indices = @transform_0, window_bounds = array<i64: 10, 256>}, {pipeline_mode = #tpu.pipeline_mode<synchronous>, transform_indices = @transform_1, window_bounds = array<i64: 10, 10>}, {pipeline_mode = #tpu.pipeline_mode<synchronous>, transform_indices = @transform_2, window_bounds = array<i64: 10, 1>}, {transform_indices = @transform_3, window_bounds = array<i64: 10, 256>}, {transform_indices = @transform_4, window_bounds = array<i64: 10, 256>}]} {
    %c0 = arith.constant 0 : index
    %c0_0 = arith.constant 0 : index
    %0 = vector.load %arg2[%c0, %c0_0] : memref<10x10xf32, #tpu.memory_space<vmem>>, vector<10x10xf32>
    %1 = arith.truncf %0 : vector<10x10xf32> to vector<10x10xbf16>
    %c0_1 = arith.constant 0 : index
    %c0_2 = arith.constant 0 : index
    %2 = vector.load %arg1[%c0_1, %c0_2] : memref<10x256xf32, #tpu.memory_space<vmem>>, vector<10x256xf32>
    %3 = arith.truncf %2 : vector<10x256xf32> to vector<10x256xbf16>
    %cst = arith.constant dense<0.000000e+00> : vector<10x256xf32>
    %4 = tpu.matmul %1, %3, %cst {dimension_numbers = #tpu.dot_dimension_numbers<[1], [0], [0], [1], [0, 0, 1, 1], [], []>} : vector<10x10xbf16>, vector<10x256xbf16>, vector<10x256xf32> -> vector<10x256xf32>
    %c0_3 = arith.constant 0 : index
    %c0_4 = arith.constant 0 : index
    %5 = vector.load %arg3[%c0_3, %c0_4] : memref<10x1xf32, #tpu.memory_space<vmem>>, vector<10x1xf32>
    %6 = vector.broadcast %5 : vector<10x1xf32> to vector<10x256xf32>
    %7 = arith.addf %4, %6 : vector<10x256xf32>
    %c0_5 = arith.constant 0 : index
    %c0_6 = arith.constant 0 : index
    %8 = vector.load %arg4[%c0_5, %c0_6] : memref<10x256xf32, #tpu.memory_space<vmem>>, vector<10x256xf32>
    %9 = arith.addf %7, %8 : vector<10x256xf32>
    %10 = arith.mulf %9, %9 : vector<10x256xf32>
    %11 = arith.mulf %9, %10 : vector<10x256xf32>
    %cst_7 = arith.constant 4.471500e-02 : f32
    %12 = vector.broadcast %cst_7 : f32 to vector<10x256xf32>
    %13 = arith.mulf %12, %11 : vector<10x256xf32>
    %14 = arith.addf %9, %13 : vector<10x256xf32>
    %cst_8 = arith.constant 0.797884583 : f32
    %15 = vector.broadcast %cst_8 : f32 to vector<10x256xf32>
    %16 = arith.mulf %15, %14 : vector<10x256xf32>
    %17 = math.tanh %16 : vector<10x256xf32>
    %cst_9 = arith.constant 1.000000e+00 : f32
    %18 = vector.broadcast %cst_9 : f32 to vector<10x256xf32>
    %19 = arith.addf %18, %17 : vector<10x256xf32>
    %cst_10 = arith.constant 5.000000e-01 : f32
    %20 = vector.broadcast %cst_10 : f32 to vector<10x256xf32>
    %21 = arith.mulf %20, %19 : vector<10x256xf32>
    %22 = arith.mulf %9, %21 : vector<10x256xf32>
    %c0_11 = arith.constant 0 : index
    %c0_12 = arith.constant 0 : index
    %23 = vector.load %arg5[%c0_11, %c0_12] : memref<10x256xf32, #tpu.memory_space<vmem>>, vector<10x256xf32>
    tpu.vector_store %arg5[%c0_11, %c0_12], %22 {strides = array<i32>} : memref<10x256xf32, #tpu.memory_space<vmem>>, vector<10x256xf32>,
    return
  }
  func.func @transform_0(%arg0: i32) -> (i32, i32) {
    %c0_i32 = arith.constant 0 : i32
    %c0_i32_0 = arith.constant 0 : i32
    return %c0_i32, %arg0 : i32, i32
  }
  func.func @transform_1(%arg0: i32) -> (i32, i32) {
    %c0_i32 = arith.constant 0 : i32
    %c0_i32_0 = arith.constant 0 : i32
    %c0_i32_1 = arith.constant 0 : i32
    return %c0_i32, %c0_i32_0 : i32, i32
  }
  func.func @transform_2(%arg0: i32) -> (i32, i32) {
    %c0_i32 = arith.constant 0 : i32
    %c0_i32_0 = arith.constant 0 : i32
    %c0_i32_1 = arith.constant 0 : i32
    return %c0_i32, %c0_i32_0 : i32, i32
  }
  func.func @transform_3(%arg0: i32) -> (i32, i32) {
    %c0_i32 = arith.constant 0 : i32
    %c0_i32_0 = arith.constant 0 : i32
    return %c0_i32, %arg0 : i32, i32
  }
  func.func @transform_4(%arg0: i32) -> (i32, i32) {
    %c0_i32 = arith.constant 0 : i32
    %c0_i32_0 = arith.constant 0 : i32
    return %c0_i32, %arg0 : i32, i32
  }
}

module attributes {stable_mosaic.version = 11 : i64} {
  func.func @_proj_tail_kernel(%arg0: i32, %arg1: memref<10x256xf32, #tpu.memory_space<vmem>>, %arg2: memref<128x10xf32, #tpu.memory_space<vmem>>, %arg3: memref<128x1xf32, #tpu.memory_space<vmem>>, %arg4: memref<3x128xf32, #tpu.memory_space<vmem>>, %arg5: memref<3x1xf32, #tpu.memory_space<vmem>>, %arg6: memref<3x256xf32, #tpu.memory_space<vmem>>) attributes {dimension_semantics = [#tpu.dimension_semantics<parallel>], iteration_bounds = array<i64: 1>, scalar_prefetch = 0 : i64, scratch_operands = 0 : i64, tpu.core_type = #tpu.core_type<tc>, window_params = [{transform_indices = @transform_0, window_bounds = array<i64: 10, 256>}, {pipeline_mode = #tpu.pipeline_mode<synchronous>, transform_indices = @transform_1, window_bounds = array<i64: 128, 10>}, {pipeline_mode = #tpu.pipeline_mode<synchronous>, transform_indices = @transform_2, window_bounds = array<i64: 128, 1>}, {pipeline_mode = #tpu.pipeline_mode<synchronous>, transform_indices = @transform_3, window_bounds = array<i64: 3, 128>}, {pipeline_mode = #tpu.pipeline_mode<synchronous>, transform_indices = @transform_4, window_bounds = array<i64: 3, 1>}, {transform_indices = @transform_5, window_bounds = array<i64: 3, 256>}]} {
    %c0 = arith.constant 0 : index
    %c0_0 = arith.constant 0 : index
    %0 = vector.load %arg1[%c0, %c0_0] : memref<10x256xf32, #tpu.memory_space<vmem>>, vector<10x256xf32>
    %c0_1 = arith.constant 0 : index
    %c0_2 = arith.constant 0 : index
    %1 = vector.load %arg2[%c0_1, %c0_2] : memref<128x10xf32, #tpu.memory_space<vmem>>, vector<128x10xf32>
    %2 = arith.truncf %1 : vector<128x10xf32> to vector<128x10xbf16>
    %3 = arith.truncf %0 : vector<10x256xf32> to vector<10x256xbf16>
    %cst = arith.constant dense<0.000000e+00> : vector<128x256xf32>
    %4 = tpu.matmul %2, %3, %cst {dimension_numbers = #tpu.dot_dimension_numbers<[1], [0], [0], [1], [0, 0, 1, 1], [], []>} : vector<128x10xbf16>, vector<10x256xbf16>, vector<128x256xf32> -> vector<128x256xf32>
    %c0_3 = arith.constant 0 : index
    %c0_4 = arith.constant 0 : index
    %5 = vector.load %arg3[%c0_3, %c0_4] : memref<128x1xf32, #tpu.memory_space<vmem>>, vector<128x1xf32>
    %6 = vector.broadcast %5 : vector<128x1xf32> to vector<128x256xf32>
    %7 = arith.addf %4, %6 : vector<128x256xf32>
    %8 = arith.mulf %7, %7 : vector<128x256xf32>
    %9 = arith.mulf %7, %8 : vector<128x256xf32>
    %cst_5 = arith.constant 4.471500e-02 : f32
    %10 = vector.broadcast %cst_5 : f32 to vector<128x256xf32>
    %11 = arith.mulf %10, %9 : vector<128x256xf32>
    %12 = arith.addf %7, %11 : vector<128x256xf32>
    %cst_6 = arith.constant 0.797884583 : f32
    %13 = vector.broadcast %cst_6 : f32 to vector<128x256xf32>
    %14 = arith.mulf %13, %12 : vector<128x256xf32>
    %15 = math.tanh %14 : vector<128x256xf32>
    %cst_7 = arith.constant 1.000000e+00 : f32
    %16 = vector.broadcast %cst_7 : f32 to vector<128x256xf32>
    %17 = arith.addf %16, %15 : vector<128x256xf32>
    %cst_8 = arith.constant 5.000000e-01 : f32
    %18 = vector.broadcast %cst_8 : f32 to vector<128x256xf32>
    %19 = arith.mulf %18, %17 : vector<128x256xf32>
    %20 = arith.mulf %7, %19 : vector<128x256xf32>
    %c0_9 = arith.constant 0 : index
    %c0_10 = arith.constant 0 : index
    %21 = vector.load %arg4[%c0_9, %c0_10] : memref<3x128xf32, #tpu.memory_space<vmem>>, vector<3x128xf32>
    %22 = arith.truncf %21 : vector<3x128xf32> to vector<3x128xbf16>
    %23 = arith.truncf %20 : vector<128x256xf32> to vector<128x256xbf16>
    %cst_11 = arith.constant dense<0.000000e+00> : vector<3x256xf32>
    %24 = tpu.matmul %22, %23, %cst_11 {dimension_numbers = #tpu.dot_dimension_numbers<[1], [0], [0], [1], [0, 0, 1, 1], [], []>} : vector<3x128xbf16>, vector<128x256xbf16>, vector<3x256xf32> -> vector<3x256xf32>
    %c0_12 = arith.constant 0 : index
    %c0_13 = arith.constant 0 : index
    %25 = vector.load %arg5[%c0_12, %c0_13] : memref<3x1xf32, #tpu.memory_space<vmem>>, vector<3x1xf32>
    %26 = vector.broadcast %25 : vector<3x1xf32> to vector<3x256xf32>
    %27 = arith.addf %24, %26 : vector<3x256xf32>
    %28 = arith.negf %27 : vector<3x256xf32>
    %29 = math.exp %28 : vector<3x256xf32>
    %cst_14 = arith.constant 1.000000e+00 : f32
    %30 = vector.broadcast %cst_14 : f32 to vector<3x256xf32>
    %31 = arith.addf %30, %29 : vector<3x256xf32>
    %32 = arith.divf %30, %31 : vector<3x256xf32>
    %c0_15 = arith.constant 0 : index
    %c0_16 = arith.constant 0 : index
    %33 = vector.load %arg6[%c0_15, %c0_16] : memref<3x256xf32, #tpu.memory_space<vmem>>, vector<3x256xf32>
    tpu.vector_store %arg6[%c0_15, %c0_16], %32 {strides = array<i32>} : memref<3x256xf32, #tpu.memory_space<vmem>>, vector<3x256xf32>,
    return
  }
  func.func @transform_0(%arg0: i32) -> (i32, i32) {
    %c0_i32 = arith.constant 0 : i32
    %c0_i32_0 = arith.constant 0 : i32
    return %c0_i32, %arg0 : i32, i32
  }
  func.func @transform_1(%arg0: i32) -> (i32, i32) {
    %c0_i32 = arith.constant 0 : i32
    %c0_i32_0 = arith.constant 0 : i32
    %c0_i32_1 = arith.constant 0 : i32
    return %c0_i32, %c0_i32_0 : i32, i32
  }
  func.func @transform_2(%arg0: i32) -> (i32, i32) {
    %c0_i32 = arith.constant 0 : i32
    %c0_i32_0 = arith.constant 0 : i32
    %c0_i32_1 = arith.constant 0 : i32
    return %c0_i32, %c0_i32_0 : i32, i32
  }
  func.func @transform_3(%arg0: i32) -> (i32, i32) {
    %c0_i32 = arith.constant 0 : i32
    %c0_i32_0 = arith.constant 0 : i32
    %c0_i32_1 = arith.constant 0 : i32
    return %c0_i32, %c0_i32_0 : i32, i32
  }
  func.func @transform_4(%arg0: i32) -> (i32, i32) {
    %c0_i32 = arith.constant 0 : i32
    %c0_i32_0 = arith.constant 0 : i32
    %c0_i32_1 = arith.constant 0 : i32
    return %c0_i32, %c0_i32_0 : i32, i32
  }
  func.func @transform_5(%arg0: i32) -> (i32, i32) {
    %c0_i32 = arith.constant 0 : i32
    %c0_i32_0 = arith.constant 0 : i32
    return %c0_i32, %arg0 : i32, i32
  }
}

module attributes {stable_mosaic.version = 11 : i64} {
  func.func @_matmul_act_kernel(%arg0: i32, %arg1: memref<2x256xf32, #tpu.memory_space<vmem>>, %arg2: memref<5x2xf32, #tpu.memory_space<vmem>>, %arg3: memref<5x1xf32, #tpu.memory_space<vmem>>, %arg4: memref<5x256xf32, #tpu.memory_space<vmem>>) attributes {dimension_semantics = [#tpu.dimension_semantics<parallel>], iteration_bounds = array<i64: 1>, scalar_prefetch = 0 : i64, scratch_operands = 0 : i64, tpu.core_type = #tpu.core_type<tc>, window_params = [{transform_indices = @transform_0, window_bounds = array<i64: 2, 256>}, {pipeline_mode = #tpu.pipeline_mode<synchronous>, transform_indices = @transform_1, window_bounds = array<i64: 5, 2>}, {pipeline_mode = #tpu.pipeline_mode<synchronous>, transform_indices = @transform_2, window_bounds = array<i64: 5, 1>}, {transform_indices = @transform_3, window_bounds = array<i64: 5, 256>}]} {
    %c0 = arith.constant 0 : index
    %c0_0 = arith.constant 0 : index
    %0 = vector.load %arg2[%c0, %c0_0] : memref<5x2xf32, #tpu.memory_space<vmem>>, vector<5x2xf32>
    %1 = arith.truncf %0 : vector<5x2xf32> to vector<5x2xbf16>
    %c0_1 = arith.constant 0 : index
    %c0_2 = arith.constant 0 : index
    %2 = vector.load %arg1[%c0_1, %c0_2] : memref<2x256xf32, #tpu.memory_space<vmem>>, vector<2x256xf32>
    %3 = arith.truncf %2 : vector<2x256xf32> to vector<2x256xbf16>
    %cst = arith.constant dense<0.000000e+00> : vector<5x256xf32>
    %4 = tpu.matmul %1, %3, %cst {dimension_numbers = #tpu.dot_dimension_numbers<[1], [0], [0], [1], [0, 0, 1, 1], [], []>} : vector<5x2xbf16>, vector<2x256xbf16>, vector<5x256xf32> -> vector<5x256xf32>
    %c0_3 = arith.constant 0 : index
    %c0_4 = arith.constant 0 : index
    %5 = vector.load %arg3[%c0_3, %c0_4] : memref<5x1xf32, #tpu.memory_space<vmem>>, vector<5x1xf32>
    %6 = vector.broadcast %5 : vector<5x1xf32> to vector<5x256xf32>
    %7 = arith.addf %4, %6 : vector<5x256xf32>
    %c0_5 = arith.constant 0 : index
    %c0_6 = arith.constant 0 : index
    %8 = vector.load %arg4[%c0_5, %c0_6] : memref<5x256xf32, #tpu.memory_space<vmem>>, vector<5x256xf32>
    tpu.vector_store %arg4[%c0_5, %c0_6], %7 {strides = array<i32>} : memref<5x256xf32, #tpu.memory_space<vmem>>, vector<5x256xf32>,
    return
  }
  func.func @transform_0(%arg0: i32) -> (i32, i32) {
    %c0_i32 = arith.constant 0 : i32
    %c0_i32_0 = arith.constant 0 : i32
    return %c0_i32, %arg0 : i32, i32
  }
  func.func @transform_1(%arg0: i32) -> (i32, i32) {
    %c0_i32 = arith.constant 0 : i32
    %c0_i32_0 = arith.constant 0 : i32
    %c0_i32_1 = arith.constant 0 : i32
    return %c0_i32, %c0_i32_0 : i32, i32
  }
  func.func @transform_2(%arg0: i32) -> (i32, i32) {
    %c0_i32 = arith.constant 0 : i32
    %c0_i32_0 = arith.constant 0 : i32
    %c0_i32_1 = arith.constant 0 : i32
    return %c0_i32, %c0_i32_0 : i32, i32
  }
  func.func @transform_3(%arg0: i32) -> (i32, i32) {
    %c0_i32 = arith.constant 0 : i32
    %c0_i32_0 = arith.constant 0 : i32
    return %c0_i32, %arg0 : i32, i32
  }
}

module attributes {stable_mosaic.version = 11 : i64} {
  func.func @_proj_tail_kernel(%arg0: i32, %arg1: memref<5x256xf32, #tpu.memory_space<vmem>>, %arg2: memref<128x5xf32, #tpu.memory_space<vmem>>, %arg3: memref<128x1xf32, #tpu.memory_space<vmem>>, %arg4: memref<1x128xf32, #tpu.memory_space<vmem>>, %arg5: memref<1x1xf32, #tpu.memory_space<vmem>>, %arg6: memref<1x256xf32, #tpu.memory_space<vmem>>) attributes {dimension_semantics = [#tpu.dimension_semantics<parallel>], iteration_bounds = array<i64: 1>, scalar_prefetch = 0 : i64, scratch_operands = 0 : i64, tpu.core_type = #tpu.core_type<tc>, window_params = [{transform_indices = @transform_0, window_bounds = array<i64: 5, 256>}, {pipeline_mode = #tpu.pipeline_mode<synchronous>, transform_indices = @transform_1, window_bounds = array<i64: 128, 5>}, {pipeline_mode = #tpu.pipeline_mode<synchronous>, transform_indices = @transform_2, window_bounds = array<i64: 128, 1>}, {pipeline_mode = #tpu.pipeline_mode<synchronous>, transform_indices = @transform_3, window_bounds = array<i64: 1, 128>}, {pipeline_mode = #tpu.pipeline_mode<synchronous>, transform_indices = @transform_4, window_bounds = array<i64: 1, 1>}, {transform_indices = @transform_5, window_bounds = array<i64: 1, 256>}]} {
    %c0 = arith.constant 0 : index
    %c0_0 = arith.constant 0 : index
    %0 = vector.load %arg1[%c0, %c0_0] : memref<5x256xf32, #tpu.memory_space<vmem>>, vector<5x256xf32>
    %c0_1 = arith.constant 0 : index
    %c0_2 = arith.constant 0 : index
    %1 = vector.load %arg2[%c0_1, %c0_2] : memref<128x5xf32, #tpu.memory_space<vmem>>, vector<128x5xf32>
    %2 = arith.truncf %1 : vector<128x5xf32> to vector<128x5xbf16>
    %3 = arith.truncf %0 : vector<5x256xf32> to vector<5x256xbf16>
    %cst = arith.constant dense<0.000000e+00> : vector<128x256xf32>
    %4 = tpu.matmul %2, %3, %cst {dimension_numbers = #tpu.dot_dimension_numbers<[1], [0], [0], [1], [0, 0, 1, 1], [], []>} : vector<128x5xbf16>, vector<5x256xbf16>, vector<128x256xf32> -> vector<128x256xf32>
    %c0_3 = arith.constant 0 : index
    %c0_4 = arith.constant 0 : index
    %5 = vector.load %arg3[%c0_3, %c0_4] : memref<128x1xf32, #tpu.memory_space<vmem>>, vector<128x1xf32>
    %6 = vector.broadcast %5 : vector<128x1xf32> to vector<128x256xf32>
    %7 = arith.addf %4, %6 : vector<128x256xf32>
    %8 = arith.mulf %7, %7 : vector<128x256xf32>
    %9 = arith.mulf %7, %8 : vector<128x256xf32>
    %cst_5 = arith.constant 4.471500e-02 : f32
    %10 = vector.broadcast %cst_5 : f32 to vector<128x256xf32>
    %11 = arith.mulf %10, %9 : vector<128x256xf32>
    %12 = arith.addf %7, %11 : vector<128x256xf32>
    %cst_6 = arith.constant 0.797884583 : f32
    %13 = vector.broadcast %cst_6 : f32 to vector<128x256xf32>
    %14 = arith.mulf %13, %12 : vector<128x256xf32>
    %15 = math.tanh %14 : vector<128x256xf32>
    %cst_7 = arith.constant 1.000000e+00 : f32
    %16 = vector.broadcast %cst_7 : f32 to vector<128x256xf32>
    %17 = arith.addf %16, %15 : vector<128x256xf32>
    %cst_8 = arith.constant 5.000000e-01 : f32
    %18 = vector.broadcast %cst_8 : f32 to vector<128x256xf32>
    %19 = arith.mulf %18, %17 : vector<128x256xf32>
    %20 = arith.mulf %7, %19 : vector<128x256xf32>
    %c0_9 = arith.constant 0 : index
    %c0_10 = arith.constant 0 : index
    %21 = vector.load %arg4[%c0_9, %c0_10] : memref<1x128xf32, #tpu.memory_space<vmem>>, vector<1x128xf32>
    %22 = arith.truncf %21 : vector<1x128xf32> to vector<1x128xbf16>
    %23 = arith.truncf %20 : vector<128x256xf32> to vector<128x256xbf16>
    %cst_11 = arith.constant dense<0.000000e+00> : vector<1x256xf32>
    %24 = tpu.matmul %22, %23, %cst_11 {dimension_numbers = #tpu.dot_dimension_numbers<[1], [0], [0], [1], [0, 0, 1, 1], [], []>} : vector<1x128xbf16>, vector<128x256xbf16>, vector<1x256xf32> -> vector<1x256xf32>
    %c0_12 = arith.constant 0 : index
    %c0_13 = arith.constant 0 : index
    %25 = vector.load %arg5[%c0_12, %c0_13] : memref<1x1xf32, #tpu.memory_space<vmem>>, vector<1x1xf32>
    %26 = vector.broadcast %25 : vector<1x1xf32> to vector<1x256xf32>
    %27 = arith.addf %24, %26 : vector<1x256xf32>
    %28 = arith.negf %27 : vector<1x256xf32>
    %29 = math.exp %28 : vector<1x256xf32>
    %cst_14 = arith.constant 1.000000e+00 : f32
    %30 = vector.broadcast %cst_14 : f32 to vector<1x256xf32>
    %31 = arith.addf %30, %29 : vector<1x256xf32>
    %32 = arith.divf %30, %31 : vector<1x256xf32>
    %c0_15 = arith.constant 0 : index
    %c0_16 = arith.constant 0 : index
    %33 = vector.load %arg6[%c0_15, %c0_16] : memref<1x256xf32, #tpu.memory_space<vmem>>, vector<1x256xf32>
    tpu.vector_store %arg6[%c0_15, %c0_16], %32 {strides = array<i32>} : memref<1x256xf32, #tpu.memory_space<vmem>>, vector<1x256xf32>,
    return
  }
  func.func @transform_0(%arg0: i32) -> (i32, i32) {
    %c0_i32 = arith.constant 0 : i32
    %c0_i32_0 = arith.constant 0 : i32
    return %c0_i32, %arg0 : i32, i32
  }
  func.func @transform_1(%arg0: i32) -> (i32, i32) {
    %c0_i32 = arith.constant 0 : i32
    %c0_i32_0 = arith.constant 0 : i32
    %c0_i32_1 = arith.constant 0 : i32
    return %c0_i32, %c0_i32_0 : i32, i32
  }
  func.func @transform_2(%arg0: i32) -> (i32, i32) {
    %c0_i32 = arith.constant 0 : i32
    %c0_i32_0 = arith.constant 0 : i32
    %c0_i32_1 = arith.constant 0 : i32
    return %c0_i32, %c0_i32_0 : i32, i32
  }
  func.func @transform_3(%arg0: i32) -> (i32, i32) {
    %c0_i32 = arith.constant 0 : i32
    %c0_i32_0 = arith.constant 0 : i32
    %c0_i32_1 = arith.constant 0 : i32
    return %c0_i32, %c0_i32_0 : i32, i32
  }
  func.func @transform_4(%arg0: i32) -> (i32, i32) {
    %c0_i32 = arith.constant 0 : i32
    %c0_i32_0 = arith.constant 0 : i32
    %c0_i32_1 = arith.constant 0 : i32
    return %c0_i32, %c0_i32_0 : i32, i32
  }
  func.func @transform_5(%arg0: i32) -> (i32, i32) {
    %c0_i32 = arith.constant 0 : i32
    %c0_i32_0 = arith.constant 0 : i32
    return %c0_i32, %arg0 : i32, i32
  }
}

module attributes {stable_mosaic.version = 11 : i64} {
  func.func @_fno_block_kernel(%arg0: i32, %arg1: memref<5x256xf32, #tpu.memory_space<vmem>>, %arg2: memref<5x5xf32, #tpu.memory_space<vmem>>, %arg3: memref<5x1xf32, #tpu.memory_space<vmem>>, %arg4: memref<5x256xf32, #tpu.memory_space<vmem>>, %arg5: memref<5x256xf32, #tpu.memory_space<vmem>>) attributes {dimension_semantics = [#tpu.dimension_semantics<parallel>], iteration_bounds = array<i64: 1>, scalar_prefetch = 0 : i64, scratch_operands = 0 : i64, tpu.core_type = #tpu.core_type<tc>, window_params = [{transform_indices = @transform_0, window_bounds = array<i64: 5, 256>}, {pipeline_mode = #tpu.pipeline_mode<synchronous>, transform_indices = @transform_1, window_bounds = array<i64: 5, 5>}, {pipeline_mode = #tpu.pipeline_mode<synchronous>, transform_indices = @transform_2, window_bounds = array<i64: 5, 1>}, {transform_indices = @transform_3, window_bounds = array<i64: 5, 256>}, {transform_indices = @transform_4, window_bounds = array<i64: 5, 256>}]} {
    %c0 = arith.constant 0 : index
    %c0_0 = arith.constant 0 : index
    %0 = vector.load %arg2[%c0, %c0_0] : memref<5x5xf32, #tpu.memory_space<vmem>>, vector<5x5xf32>
    %1 = arith.truncf %0 : vector<5x5xf32> to vector<5x5xbf16>
    %c0_1 = arith.constant 0 : index
    %c0_2 = arith.constant 0 : index
    %2 = vector.load %arg1[%c0_1, %c0_2] : memref<5x256xf32, #tpu.memory_space<vmem>>, vector<5x256xf32>
    %3 = arith.truncf %2 : vector<5x256xf32> to vector<5x256xbf16>
    %cst = arith.constant dense<0.000000e+00> : vector<5x256xf32>
    %4 = tpu.matmul %1, %3, %cst {dimension_numbers = #tpu.dot_dimension_numbers<[1], [0], [0], [1], [0, 0, 1, 1], [], []>} : vector<5x5xbf16>, vector<5x256xbf16>, vector<5x256xf32> -> vector<5x256xf32>
    %c0_3 = arith.constant 0 : index
    %c0_4 = arith.constant 0 : index
    %5 = vector.load %arg3[%c0_3, %c0_4] : memref<5x1xf32, #tpu.memory_space<vmem>>, vector<5x1xf32>
    %6 = vector.broadcast %5 : vector<5x1xf32> to vector<5x256xf32>
    %7 = arith.addf %4, %6 : vector<5x256xf32>
    %c0_5 = arith.constant 0 : index
    %c0_6 = arith.constant 0 : index
    %8 = vector.load %arg4[%c0_5, %c0_6] : memref<5x256xf32, #tpu.memory_space<vmem>>, vector<5x256xf32>
    %9 = arith.addf %7, %8 : vector<5x256xf32>
    %c0_7 = arith.constant 0 : index
    %c0_8 = arith.constant 0 : index
    %10 = vector.load %arg5[%c0_7, %c0_8] : memref<5x256xf32, #tpu.memory_space<vmem>>, vector<5x256xf32>
    tpu.vector_store %arg5[%c0_7, %c0_8], %9 {strides = array<i32>} : memref<5x256xf32, #tpu.memory_space<vmem>>, vector<5x256xf32>,
    return
  }
  func.func @transform_0(%arg0: i32) -> (i32, i32) {
    %c0_i32 = arith.constant 0 : i32
    %c0_i32_0 = arith.constant 0 : i32
    return %c0_i32, %arg0 : i32, i32
  }
  func.func @transform_1(%arg0: i32) -> (i32, i32) {
    %c0_i32 = arith.constant 0 : i32
    %c0_i32_0 = arith.constant 0 : i32
    %c0_i32_1 = arith.constant 0 : i32
    return %c0_i32, %c0_i32_0 : i32, i32
  }
  func.func @transform_2(%arg0: i32) -> (i32, i32) {
    %c0_i32 = arith.constant 0 : i32
    %c0_i32_0 = arith.constant 0 : i32
    %c0_i32_1 = arith.constant 0 : i32
    return %c0_i32, %c0_i32_0 : i32, i32
  }
  func.func @transform_3(%arg0: i32) -> (i32, i32) {
    %c0_i32 = arith.constant 0 : i32
    %c0_i32_0 = arith.constant 0 : i32
    return %c0_i32, %arg0 : i32, i32
  }
  func.func @transform_4(%arg0: i32) -> (i32, i32) {
    %c0_i32 = arith.constant 0 : i32
    %c0_i32_0 = arith.constant 0 : i32
    return %c0_i32, %arg0 : i32, i32
  }
}

module attributes {stable_mosaic.version = 11 : i64} {
  func.func @_fno_block_kernel(%arg0: i32, %arg1: memref<5x256xf32, #tpu.memory_space<vmem>>, %arg2: memref<5x5xf32, #tpu.memory_space<vmem>>, %arg3: memref<5x1xf32, #tpu.memory_space<vmem>>, %arg4: memref<5x256xf32, #tpu.memory_space<vmem>>, %arg5: memref<5x256xf32, #tpu.memory_space<vmem>>) attributes {dimension_semantics = [#tpu.dimension_semantics<parallel>], iteration_bounds = array<i64: 1>, scalar_prefetch = 0 : i64, scratch_operands = 0 : i64, tpu.core_type = #tpu.core_type<tc>, window_params = [{transform_indices = @transform_0, window_bounds = array<i64: 5, 256>}, {pipeline_mode = #tpu.pipeline_mode<synchronous>, transform_indices = @transform_1, window_bounds = array<i64: 5, 5>}, {pipeline_mode = #tpu.pipeline_mode<synchronous>, transform_indices = @transform_2, window_bounds = array<i64: 5, 1>}, {transform_indices = @transform_3, window_bounds = array<i64: 5, 256>}, {transform_indices = @transform_4, window_bounds = array<i64: 5, 256>}]} {
    %c0 = arith.constant 0 : index
    %c0_0 = arith.constant 0 : index
    %0 = vector.load %arg2[%c0, %c0_0] : memref<5x5xf32, #tpu.memory_space<vmem>>, vector<5x5xf32>
    %1 = arith.truncf %0 : vector<5x5xf32> to vector<5x5xbf16>
    %c0_1 = arith.constant 0 : index
    %c0_2 = arith.constant 0 : index
    %2 = vector.load %arg1[%c0_1, %c0_2] : memref<5x256xf32, #tpu.memory_space<vmem>>, vector<5x256xf32>
    %3 = arith.truncf %2 : vector<5x256xf32> to vector<5x256xbf16>
    %cst = arith.constant dense<0.000000e+00> : vector<5x256xf32>
    %4 = tpu.matmul %1, %3, %cst {dimension_numbers = #tpu.dot_dimension_numbers<[1], [0], [0], [1], [0, 0, 1, 1], [], []>} : vector<5x5xbf16>, vector<5x256xbf16>, vector<5x256xf32> -> vector<5x256xf32>
    %c0_3 = arith.constant 0 : index
    %c0_4 = arith.constant 0 : index
    %5 = vector.load %arg3[%c0_3, %c0_4] : memref<5x1xf32, #tpu.memory_space<vmem>>, vector<5x1xf32>
    %6 = vector.broadcast %5 : vector<5x1xf32> to vector<5x256xf32>
    %7 = arith.addf %4, %6 : vector<5x256xf32>
    %c0_5 = arith.constant 0 : index
    %c0_6 = arith.constant 0 : index
    %8 = vector.load %arg4[%c0_5, %c0_6] : memref<5x256xf32, #tpu.memory_space<vmem>>, vector<5x256xf32>
    %9 = arith.addf %7, %8 : vector<5x256xf32>
    %10 = arith.mulf %9, %9 : vector<5x256xf32>
    %11 = arith.mulf %9, %10 : vector<5x256xf32>
    %cst_7 = arith.constant 4.471500e-02 : f32
    %12 = vector.broadcast %cst_7 : f32 to vector<5x256xf32>
    %13 = arith.mulf %12, %11 : vector<5x256xf32>
    %14 = arith.addf %9, %13 : vector<5x256xf32>
    %cst_8 = arith.constant 0.797884583 : f32
    %15 = vector.broadcast %cst_8 : f32 to vector<5x256xf32>
    %16 = arith.mulf %15, %14 : vector<5x256xf32>
    %17 = math.tanh %16 : vector<5x256xf32>
    %cst_9 = arith.constant 1.000000e+00 : f32
    %18 = vector.broadcast %cst_9 : f32 to vector<5x256xf32>
    %19 = arith.addf %18, %17 : vector<5x256xf32>
    %cst_10 = arith.constant 5.000000e-01 : f32
    %20 = vector.broadcast %cst_10 : f32 to vector<5x256xf32>
    %21 = arith.mulf %20, %19 : vector<5x256xf32>
    %22 = arith.mulf %9, %21 : vector<5x256xf32>
    %c0_11 = arith.constant 0 : index
    %c0_12 = arith.constant 0 : index
    %23 = vector.load %arg5[%c0_11, %c0_12] : memref<5x256xf32, #tpu.memory_space<vmem>>, vector<5x256xf32>
    tpu.vector_store %arg5[%c0_11, %c0_12], %22 {strides = array<i32>} : memref<5x256xf32, #tpu.memory_space<vmem>>, vector<5x256xf32>,
    return
  }
  func.func @transform_0(%arg0: i32) -> (i32, i32) {
    %c0_i32 = arith.constant 0 : i32
    %c0_i32_0 = arith.constant 0 : i32
    return %c0_i32, %arg0 : i32, i32
  }
  func.func @transform_1(%arg0: i32) -> (i32, i32) {
    %c0_i32 = arith.constant 0 : i32
    %c0_i32_0 = arith.constant 0 : i32
    %c0_i32_1 = arith.constant 0 : i32
    return %c0_i32, %c0_i32_0 : i32, i32
  }
  func.func @transform_2(%arg0: i32) -> (i32, i32) {
    %c0_i32 = arith.constant 0 : i32
    %c0_i32_0 = arith.constant 0 : i32
    %c0_i32_1 = arith.constant 0 : i32
    return %c0_i32, %c0_i32_0 : i32, i32
  }
  func.func @transform_3(%arg0: i32) -> (i32, i32) {
    %c0_i32 = arith.constant 0 : i32
    %c0_i32_0 = arith.constant 0 : i32
    return %c0_i32, %arg0 : i32, i32
  }
  func.func @transform_4(%arg0: i32) -> (i32, i32) {
    %c0_i32 = arith.constant 0 : i32
    %c0_i32_0 = arith.constant 0 : i32
    return %c0_i32, %arg0 : i32, i32
  }
}

</mosaic_0001>

<llo_original>
// kernel: _lambda_.12
$region0: #{_lambda_.12}
  #allocation0 [shape = 'u32[]', space=smem, size = 0x4, offset = 0x4, fixed_abs, tag = 'smem constant byte address 0x4 - core index']
  #allocation1 [shape = 'u32[144,128]{1,0:T(1,128)}', space=vmem, size = 0x12000, scoped, tag = 'internal scratch']
  %s0 = inlined_call_operand.vmem [shape: f32[2,256], index: 0, kind: input, shape index: {}]
  %s1 = inlined_call_operand.vmem [shape: f32[10,2], index: 1, kind: input, shape index: {}]
  %s2 = inlined_call_operand.vmem [shape: f32[10,1], index: 2, kind: input, shape index: {}]
  %s3 = inlined_call_operand.vmem [shape: f32[10,256], index: 3, kind: output, shape index: {}]
  %s4 = sld [smem:[#allocation0]]
  $region22: #{_lambda_.12} parent=0
    _
  %s6 = ssub.s32 1, %s4
  %s7 = scalar_select 0, %s6, %s4
  // Predicated region
  $region2: #{_lambda_.12} parent=0 // pred_check
    _
  $region3: #{_lambda_.12} parent=0 // pred_check_branch
    %9 = sbr.rel (0) target = $region5
  $region4: #{_lambda_.12} parent=0 // pred_region
    _
  $region5: #{_lambda_.12} parent=0 // pred_fallthru
    _
  // Predicated region
  $region6: #{_lambda_.12} parent=0 // pred_check
    _
  $region7: #{_lambda_.12} parent=0 // pred_check_branch
    %11 = sbr.rel (0) target = $region9
  $region8: #{_lambda_.12} parent=0 // pred_region
    _
  $region9: #{_lambda_.12} parent=0 // pred_fallthru
    _
  // Predicated region
  $region10: #{_lambda_.12} parent=0 // pred_check
    _
  $region11: #{_lambda_.12} parent=0 // pred_check_branch
    %13 = sbr.rel (0) target = $region13
  $region12: #{_lambda_.12} parent=0 // pred_region
    _
  $region13: #{_lambda_.12} parent=0 // pred_fallthru
    _
  %v15 = vld [vmem:[%s1] sm:$0xff]
  %v16 = vld [vmem:[%s1 + $0x8] sm:$0x3]
  %v17 = vpack.c.bf16 %v16, %v15
  %v18 = vld [vmem:[%s0] sm:$0xf]
  %v21 = vunpack.c.l.s4 1983009808
  %v22 = vunpack.c.0.s8 %v21
  %v23 = vlaneseq
  %v24 = vshrl.u32 %v23, 7
  %v25 = vsub.s32 %v22, %v24
  %v26 = vrot.slane %v18, %v25
  %v27 = vcombine.high %v26, %v26
  %v30 = vpack.c.bf16 %v26, %v26
  %v31 = vpack.c.bf16 %v27, %v27
  %v32 = vld [vmem:[%s2] sm:$0xff]
  %v33 = vld [vmem:[%s2 + $0x8] sm:$0x3]
  %35 = vset.pattern.permute.xlu0 0
  %36 = vperm.xlu0 %35, %v32
  %v37 = vpop.permute.xlu0 %36
  %40 = vset.pattern.permute.xlu0 0
  %41 = vperm.xlu0 %40, %v33
  %v42 = vpop.permute.xlu0 %41
  %vm44 = vcmask 15360
  %v46 = vsel %vm44, %v17, 0
  %vm48 = vcmask 1040384
  %v50 = vsel %vm48, %v30, 0
  %v53 = vsel %vm48, %v31, 0
  %55 = vmatprep.subr.bf16.mxu0 %v53
  %56 = vmatpush1.bf16.msra.mxu0 %v50
  %57 = vmatprep.subr.bf16.mxu0 0
  %58 = vmatpush1.bf16.msra.mxu0 0
  %59 = vmatprep.subr.bf16.mxu0 0
  %60 = vmatpush1.bf16.msra.mxu0 0
  %61 = vmatprep.subr.bf16.mxu0 0
  %62 = vmatpush1.bf16.msra.mxu0 0
  %63 = vmatprep.subr.bf16.mxu0 0
  %64 = vmatpush1.bf16.msra.mxu0 0
  %65 = vmatprep.subr.bf16.mxu0 0
  %66 = vmatpush1.bf16.msra.mxu0 0
  %67 = vmatprep.subr.bf16.mxu0 0
  %68 = vmatpush1.bf16.msra.mxu0 0
  %69 = vmatprep.subr.bf16.mxu0 0
  %70 = vmatpush1.bf16.msra.mxu0 0
  %71 = vmatprep.subr.bf16.mxu0 0
  %72 = vmatpush1.bf16.msra.mxu0 0
  %73 = vmatprep.subr.bf16.mxu0 0
  %74 = vmatpush1.bf16.msra.mxu0 0
  %75 = vmatprep.subr.bf16.mxu0 0
  %76 = vmatpush1.bf16.msra.mxu0 0
  %77 = vmatprep.subr.bf16.mxu0 0
  %78 = vmatpush1.bf16.msra.mxu0 0
  %79 = vmatprep.subr.bf16.mxu0 0
  %80 = vmatpush1.bf16.msra.mxu0 0
  %81 = vmatprep.subr.bf16.mxu0 0
  %82 = vmatpush1.bf16.msra.mxu0 0
  %83 = vmatprep.subr.bf16.mxu0 0
  %84 = vmatpush1.bf16.msra.mxu0 0
  %85 = vmatprep.subr.bf16.mxu0 0
  %86 = vmatpush1.bf16.msra.mxu0 0
  %87 = vmatprep.mubr.bf16.mxu0 0
  %88 = vmatmul.mubr.bf16.gmra.mrb[0].mxu0 %v46
  %v89 = vpop.f32.mrb[0].mxu0
  %v90 = vadd.f32 %v37, %v89
  %v91 = vpop.f32.mrb[0].mxu0
  %v92 = vadd.f32 %v37, %v91
  %v93 = vpop.f32.mrb[0].mxu0
  %v94 = vadd.f32 %v42, %v93
  %v95 = vpop.f32.mrb[0].mxu0
  %v96 = vadd.f32 %v42, %v95
  %97 = vdwg.mxu0
  %98 = vst [vmem:[%s3] sm:$0xff] %v90
  %99 = vst [vmem:[%s3 + $0x8] sm:$0xff] %v92
  %100 = vst [vmem:[%s3 + $0x10] sm:$0x3] %v94
  %101 = vst [vmem:[%s3 + $0x18] sm:$0x3] %v96
  // Predicated region
  $region14: #{_lambda_.12} parent=0 // pred_check
    _
  $region15: #{_lambda_.12} parent=0 // pred_check_branch
    %103 = sbr.rel (0) target = $region17
  $region16: #{_lambda_.12} parent=0 // pred_region
    _
  $region17: #{_lambda_.12} parent=0 // pred_fallthru
    _
  // Predicated region
  $region18: #{_lambda_.12} parent=0 // pred_check
    _
  $region19: #{_lambda_.12} parent=0 // pred_check_branch
    %105 = sbr.rel (0) target = $region21
  $region20: #{_lambda_.12} parent=0 // pred_region
    _
  $region21: #{_lambda_.12} parent=0 // pred_fallthru
    _

// kernel: reverse.12
$region0: #{reverse.12}
  #allocation0 [shape = 's32[1]{0}', space=sflag, size = 0x4, scoped, tag = 'scoped memory for reverse.12']
  %s0 = inlined_call_operand.vmem [shape: f32[1,10,16,7], index: 0, kind: input, shape index: {}]
  %s1 = inlined_call_operand.vmem [shape: f32[1,10,16,7], index: 1, kind: output, shape index: {}]
  %s2 = scalar_lea.vmem %s0, 96
  %v3 = vld [vmem:[%s2] sm:$0xff]
  %4 = vst [vmem:[%s1] sm:$0xff] %v3
  %s5 = scalar_lea.vmem %s0, 80
  %v6 = vld [vmem:[%s5] sm:$0xff]
  %s7 = scalar_lea.vmem %s1, 16
  %8 = vst [vmem:[%s7] sm:$0xff] %v6
  %s9 = scalar_lea.vmem %s0, 64
  %v10 = vld [vmem:[%s9] sm:$0xff]
  %s11 = scalar_lea.vmem %s1, 32
  %12 = vst [vmem:[%s11] sm:$0xff] %v10
  %s13 = scalar_lea.vmem %s0, 48
  %v14 = vld [vmem:[%s13] sm:$0xff]
  %s15 = scalar_lea.vmem %s1, 48
  %16 = vst [vmem:[%s15] sm:$0xff] %v14
  %s17 = scalar_lea.vmem %s0, 32
  %v18 = vld [vmem:[%s17] sm:$0xff]
  %s19 = scalar_lea.vmem %s1, 64
  %20 = vst [vmem:[%s19] sm:$0xff] %v18
  %s21 = scalar_lea.vmem %s0, 16
  %v22 = vld [vmem:[%s21] sm:$0xff]
  %s23 = scalar_lea.vmem %s1, 80
  %24 = vst [vmem:[%s23] sm:$0xff] %v22
  %v25 = vld [vmem:[%s0] sm:$0xff]
  %s26 = scalar_lea.vmem %s1, 96
  %27 = vst [vmem:[%s26] sm:$0xff] %v25
  %s28 = scalar_lea.vmem %s0, 104
  %v29 = vld [vmem:[%s28] sm:$0xff]
  %s30 = scalar_lea.vmem %s1, 8
  %31 = vst [vmem:[%s30] sm:$0xff] %v29
  %s32 = scalar_lea.vmem %s0, 88
  %v33 = vld [vmem:[%s32] sm:$0xff]
  %s34 = scalar_lea.vmem %s1, 24
  %35 = vst [vmem:[%s34] sm:$0xff] %v33
  %s36 = scalar_lea.vmem %s0, 72
  %v37 = vld [vmem:[%s36] sm:$0xff]
  %s38 = scalar_lea.vmem %s1, 40
  %39 = vst [vmem:[%s38] sm:$0xff] %v37
  %s40 = scalar_lea.vmem %s0, 56
  %v41 = vld [vmem:[%s40] sm:$0xff]
  %s42 = scalar_lea.vmem %s1, 56
  %43 = vst [vmem:[%s42] sm:$0xff] %v41
  %s44 = scalar_lea.vmem %s0, 40
  %v45 = vld [vmem:[%s44] sm:$0xff]
  %s46 = scalar_lea.vmem %s1, 72
  %47 = vst [vmem:[%s46] sm:$0xff] %v45
  %s48 = scalar_lea.vmem %s0, 24
  %v49 = vld [vmem:[%s48] sm:$0xff]
  %s50 = scalar_lea.vmem %s1, 88
  %51 = vst [vmem:[%s50] sm:$0xff] %v49
  %s52 = scalar_lea.vmem %s0, 8
  %v53 = vld [vmem:[%s52] sm:$0xff]
  %s54 = scalar_lea.vmem %s1, 104
  %55 = vst [vmem:[%s54] sm:$0xff] %v53

// kernel: _lambda_.14
$region0: #{_lambda_.14}
  #allocation0 [shape = 'u32[]', space=smem, size = 0x4, offset = 0x4, fixed_abs, tag = 'smem constant byte address 0x4 - core index']
  #allocation1 [shape = 'u32[144,128]{1,0:T(1,128)}', space=vmem, size = 0x12000, scoped, tag = 'internal scratch']
  %s0 = inlined_call_operand.vmem [shape: f32[10,256], index: 0, kind: input, shape index: {}]
  %s1 = inlined_call_operand.vmem [shape: f32[10,10], index: 1, kind: input, shape index: {}]
  %s2 = inlined_call_operand.vmem [shape: f32[10,1], index: 2, kind: input, shape index: {}]
  %s3 = inlined_call_operand.vmem [shape: f32[10,256], index: 3, kind: input, shape index: {}]
  %s4 = inlined_call_operand.vmem [shape: f32[10,256], index: 4, kind: output, shape index: {}]
  %s5 = sld [smem:[#allocation0]]
  $region26: #{_lambda_.14} parent=0
    _
  %s7 = ssub.s32 1, %s5
  %s8 = scalar_select 0, %s7, %s5
  // Predicated region
  $region2: #{_lambda_.14} parent=0 // pred_check
    _
  $region3: #{_lambda_.14} parent=0 // pred_check_branch
    %10 = sbr.rel (0) target = $region5
  $region4: #{_lambda_.14} parent=0 // pred_region
    _
  $region5: #{_lambda_.14} parent=0 // pred_fallthru
    _
  // Predicated region
  $region6: #{_lambda_.14} parent=0 // pred_check
    _
  $region7: #{_lambda_.14} parent=0 // pred_check_branch
    %12 = sbr.rel (0) target = $region9
  $region8: #{_lambda_.14} parent=0 // pred_region
    _
  $region9: #{_lambda_.14} parent=0 // pred_fallthru
    _
  // Predicated region
  $region10: #{_lambda_.14} parent=0 // pred_check
    _
  $region11: #{_lambda_.14} parent=0 // pred_check_branch
    %14 = sbr.rel (0) target = $region13
  $region12: #{_lambda_.14} parent=0 // pred_region
    _
  $region13: #{_lambda_.14} parent=0 // pred_fallthru
    _
  // Predicated region
  $region14: #{_lambda_.14} parent=0 // pred_check
    _
  $region15: #{_lambda_.14} parent=0 // pred_check_branch
    %16 = sbr.rel (0) target = $region17
  $region16: #{_lambda_.14} parent=0 // pred_region
    _
  $region17: #{_lambda_.14} parent=0 // pred_fallthru
    _
  %v18 = vld [vmem:[%s1] sm:$0xff]
  %v19 = vld [vmem:[%s1 + $0x8] sm:$0x3]
  %v20 = vpack.c.bf16 %v19, %v18
  %v21 = vld [vmem:[%s0] sm:$0xff]
  %v22 = vld [vmem:[%s0 + $0x8] sm:$0xff]
  %v23 = vld [vmem:[%s0 + $0x10] sm:$0x3]
  %v24 = vld [vmem:[%s0 + $0x18] sm:$0x3]
  %v25 = vpack.c.bf16 %v23, %v21
  %v26 = vpack.c.bf16 %v24, %v22
  %v27 = vld [vmem:[%s2] sm:$0xff]
  %v28 = vld [vmem:[%s2 + $0x8] sm:$0x3]
  %30 = vset.pattern.permute.xlu0 0
  %31 = vperm.xlu0 %30, %v27
  %v32 = vpop.permute.xlu0 %31
  %35 = vset.pattern.permute.xlu0 0
  %36 = vperm.xlu0 %35, %v28
  %v37 = vpop.permute.xlu0 %36
  %vm39 = vcmask 80896
  %v41 = vsel %vm39, %v20, 0
  %vm43 = vcmask 1044480
  %v45 = vsel %vm43, %v25, 0
  %v48 = vsel %vm43, %v26, 0
  %50 = vmatprep.subr.bf16.mxu0 %v48
  %51 = vmatpush1.bf16.msra.mxu0 %v45
  %52 = vmatprep.subr.bf16.mxu0 0
  %53 = vmatpush1.bf16.msra.mxu0 0
  %54 = vmatprep.subr.bf16.mxu0 0
  %55 = vmatpush1.bf16.msra.mxu0 0
  %56 = vmatprep.subr.bf16.mxu0 0
  %57 = vmatpush1.bf16.msra.mxu0 0
  %58 = vmatprep.subr.bf16.mxu0 0
  %59 = vmatpush1.bf16.msra.mxu0 0
  %60 = vmatprep.subr.bf16.mxu0 0
  %61 = vmatpush1.bf16.msra.mxu0 0
  %62 = vmatprep.subr.bf16.mxu0 0
  %63 = vmatpush1.bf16.msra.mxu0 0
  %64 = vmatprep.subr.bf16.mxu0 0
  %65 = vmatpush1.bf16.msra.mxu0 0
  %66 = vmatprep.subr.bf16.mxu0 0
  %67 = vmatpush1.bf16.msra.mxu0 0
  %68 = vmatprep.subr.bf16.mxu0 0
  %69 = vmatpush1.bf16.msra.mxu0 0
  %70 = vmatprep.subr.bf16.mxu0 0
  %71 = vmatpush1.bf16.msra.mxu0 0
  %72 = vmatprep.subr.bf16.mxu0 0
  %73 = vmatpush1.bf16.msra.mxu0 0
  %74 = vmatprep.subr.bf16.mxu0 0
  %75 = vmatpush1.bf16.msra.mxu0 0
  %76 = vmatprep.subr.bf16.mxu0 0
  %77 = vmatpush1.bf16.msra.mxu0 0
  %78 = vmatprep.subr.bf16.mxu0 0
  %79 = vmatpush1.bf16.msra.mxu0 0
  %80 = vmatprep.subr.bf16.mxu0 0
  %81 = vmatpush1.bf16.msra.mxu0 0
  %82 = vmatprep.mubr.bf16.mxu0 0
  %83 = vmatmul.mubr.bf16.gmra.mrb[0].mxu0 %v41
  %v84 = vpop.f32.mrb[0].mxu0
  %v85 = vadd.f32 %v32, %v84
  %v86 = vpop.f32.mrb[0].mxu0
  %v87 = vadd.f32 %v32, %v86
  %v88 = vpop.f32.mrb[0].mxu0
  %v89 = vadd.f32 %v37, %v88
  %v90 = vpop.f32.mrb[0].mxu0
  %v91 = vadd.f32 %v37, %v90
  %92 = vdwg.mxu0
  %v93 = vld [vmem:[%s3] sm:$0xff]
  %v94 = vld [vmem:[%s3 + $0x8] sm:$0xff]
  %v95 = vld [vmem:[%s3 + $0x10] sm:$0x3]
  %v96 = vld [vmem:[%s3 + $0x18] sm:$0x3]
  %v97 = vadd.f32 %v85, %v93
  %v98 = vadd.f32 %v87, %v94
  %v99 = vadd.f32 %v89, %v95
  %v100 = vadd.f32 %v91, %v96
  %101 = vst [vmem:[%s4] sm:$0xff] %v97
  %102 = vst [vmem:[%s4 + $0x8] sm:$0xff] %v98
  %103 = vst [vmem:[%s4 + $0x10] sm:$0x3] %v99
  %104 = vst [vmem:[%s4 + $0x18] sm:$0x3] %v100
  // Predicated region
  $region18: #{_lambda_.14} parent=0 // pred_check
    _
  $region19: #{_lambda_.14} parent=0 // pred_check_branch
    %106 = sbr.rel (0) target = $region21
  $region20: #{_lambda_.14} parent=0 // pred_region
    _
  $region21: #{_lambda_.14} parent=0 // pred_fallthru
    _
  // Predicated region
  $region22: #{_lambda_.14} parent=0 // pred_check
    _
  $region23: #{_lambda_.14} parent=0 // pred_check_branch
    %108 = sbr.rel (0) target = $region25
  $region24: #{_lambda_.14} parent=0 // pred_region
    _
  $region25: #{_lambda_.14} parent=0 // pred_fallthru
    _

// kernel: _lambda_.13
$region0: #{_lambda_.13}
  #allocation0 [shape = 'u32[]', space=smem, size = 0x4, offset = 0x4, fixed_abs, tag = 'smem constant byte address 0x4 - core index']
  #allocation1 [shape = 'u32[144,128]{1,0:T(1,128)}', space=vmem, size = 0x12000, scoped, tag = 'internal scratch']
  %s0 = inlined_call_operand.vmem [shape: f32[10,256], index: 0, kind: input, shape index: {}]
  %s1 = inlined_call_operand.vmem [shape: f32[10,10], index: 1, kind: input, shape index: {}]
  %s2 = inlined_call_operand.vmem [shape: f32[10,1], index: 2, kind: input, shape index: {}]
  %s3 = inlined_call_operand.vmem [shape: f32[10,256], index: 3, kind: input, shape index: {}]
  %s4 = inlined_call_operand.vmem [shape: f32[10,256], index: 4, kind: output, shape index: {}]
  %s5 = sld [smem:[#allocation0]]
  $region26: #{_lambda_.13} parent=0
    _
  %s7 = ssub.s32 1, %s5
  %s8 = scalar_select 0, %s7, %s5
  // Predicated region
  $region2: #{_lambda_.13} parent=0 // pred_check
    _
  $region3: #{_lambda_.13} parent=0 // pred_check_branch
    %10 = sbr.rel (0) target = $region5
  $region4: #{_lambda_.13} parent=0 // pred_region
    _
  $region5: #{_lambda_.13} parent=0 // pred_fallthru
    _
  // Predicated region
  $region6: #{_lambda_.13} parent=0 // pred_check
    _
  $region7: #{_lambda_.13} parent=0 // pred_check_branch
    %12 = sbr.rel (0) target = $region9
  $region8: #{_lambda_.13} parent=0 // pred_region
    _
  $region9: #{_lambda_.13} parent=0 // pred_fallthru
    _
  // Predicated region
  $region10: #{_lambda_.13} parent=0 // pred_check
    _
  $region11: #{_lambda_.13} parent=0 // pred_check_branch
    %14 = sbr.rel (0) target = $region13
  $region12: #{_lambda_.13} parent=0 // pred_region
    _
  $region13: #{_lambda_.13} parent=0 // pred_fallthru
    _
  // Predicated region
  $region14: #{_lambda_.13} parent=0 // pred_check
    _
  $region15: #{_lambda_.13} parent=0 // pred_check_branch
    %16 = sbr.rel (0) target = $region17
  $region16: #{_lambda_.13} parent=0 // pred_region
    _
  $region17: #{_lambda_.13} parent=0 // pred_fallthru
    _
  %v18 = vld [vmem:[%s1] sm:$0xff]
  %v19 = vld [vmem:[%s1 + $0x8] sm:$0x3]
  %v20 = vpack.c.bf16 %v19, %v18
  %v21 = vld [vmem:[%s0] sm:$0xff]
  %v22 = vld [vmem:[%s0 + $0x8] sm:$0xff]
  %v23 = vld [vmem:[%s0 + $0x10] sm:$0x3]
  %v24 = vld [vmem:[%s0 + $0x18] sm:$0x3]
  %v25 = vpack.c.bf16 %v23, %v21
  %v26 = vpack.c.bf16 %v24, %v22
  %v27 = vld [vmem:[%s2] sm:$0xff]
  %v28 = vld [vmem:[%s2 + $0x8] sm:$0x3]
  %30 = vset.pattern.permute.xlu0 0
  %31 = vperm.xlu0 %30, %v27
  %v32 = vpop.permute.xlu0 %31
  %35 = vset.pattern.permute.xlu0 0
  %36 = vperm.xlu0 %35, %v28
  %v37 = vpop.permute.xlu0 %36
  %vm39 = vcmask 80896
  %v41 = vsel %vm39, %v20, 0
  %vm43 = vcmask 1044480
  %v45 = vsel %vm43, %v25, 0
  %v48 = vsel %vm43, %v26, 0
  %50 = vmatprep.subr.bf16.mxu0 %v48
  %51 = vmatpush1.bf16.msra.mxu0 %v45
  %52 = vmatprep.subr.bf16.mxu0 0
  %53 = vmatpush1.bf16.msra.mxu0 0
  %54 = vmatprep.subr.bf16.mxu0 0
  %55 = vmatpush1.bf16.msra.mxu0 0
  %56 = vmatprep.subr.bf16.mxu0 0
  %57 = vmatpush1.bf16.msra.mxu0 0
  %58 = vmatprep.subr.bf16.mxu0 0
  %59 = vmatpush1.bf16.msra.mxu0 0
  %60 = vmatprep.subr.bf16.mxu0 0
  %61 = vmatpush1.bf16.msra.mxu0 0
  %62 = vmatprep.subr.bf16.mxu0 0
  %63 = vmatpush1.bf16.msra.mxu0 0
  %64 = vmatprep.subr.bf16.mxu0 0
  %65 = vmatpush1.bf16.msra.mxu0 0
  %66 = vmatprep.subr.bf16.mxu0 0
  %67 = vmatpush1.bf16.msra.mxu0 0
  %68 = vmatprep.subr.bf16.mxu0 0
  %69 = vmatpush1.bf16.msra.mxu0 0
  %70 = vmatprep.subr.bf16.mxu0 0
  %71 = vmatpush1.bf16.msra.mxu0 0
  %72 = vmatprep.subr.bf16.mxu0 0
  %73 = vmatpush1.bf16.msra.mxu0 0
  %74 = vmatprep.subr.bf16.mxu0 0
  %75 = vmatpush1.bf16.msra.mxu0 0
  %76 = vmatprep.subr.bf16.mxu0 0
  %77 = vmatpush1.bf16.msra.mxu0 0
  %78 = vmatprep.subr.bf16.mxu0 0
  %79 = vmatpush1.bf16.msra.mxu0 0
  %80 = vmatprep.subr.bf16.mxu0 0
  %81 = vmatpush1.bf16.msra.mxu0 0
  %82 = vmatprep.mubr.bf16.mxu0 0
  %83 = vmatmul.mubr.bf16.gmra.mrb[0].mxu0 %v41
  %v84 = vpop.f32.mrb[0].mxu0
  %v85 = vadd.f32 %v32, %v84
  %v86 = vpop.f32.mrb[0].mxu0
  %v87 = vadd.f32 %v32, %v86
  %v88 = vpop.f32.mrb[0].mxu0
  %v89 = vadd.f32 %v37, %v88
  %v90 = vpop.f32.mrb[0].mxu0
  %v91 = vadd.f32 %v37, %v90
  %92 = vdwg.mxu0
  %v93 = vld [vmem:[%s3] sm:$0xff]
  %v94 = vld [vmem:[%s3 + $0x8] sm:$0xff]
  %v95 = vld [vmem:[%s3 + $0x10] sm:$0x3]
  %v96 = vld [vmem:[%s3 + $0x18] sm:$0x3]
  %v97 = vadd.f32 %v85, %v93
  %v98 = vadd.f32 %v87, %v94
  %v99 = vadd.f32 %v89, %v95
  %v100 = vadd.f32 %v91, %v96
  %v101 = vmul.f32 %v97, %v97
  %v102 = vmul.f32 %v98, %v98
  %v103 = vmul.f32 %v99, %v99
  %v104 = vmul.f32 %v100, %v100
  %v105 = vmul.f32 %v97, %v101
  %v106 = vmul.f32 %v98, %v102
  %v107 = vmul.f32 %v99, %v103
  %v108 = vmul.f32 %v100, %v104
  %v109 = vmul.f32 %v105, 0.044715
  %v110 = vmul.f32 %v106, 0.044715
  %v111 = vmul.f32 %v107, 0.044715
  %v112 = vmul.f32 %v108, 0.044715
  %v113 = vadd.f32 %v97, %v109
  %v114 = vadd.f32 %v98, %v110
  %v115 = vadd.f32 %v99, %v111
  %v116 = vadd.f32 %v100, %v112
  %v117 = vmul.f32 %v113, 0.7978846
  %v118 = vmul.f32 %v114, 0.7978846
  %v119 = vmul.f32 %v115, 0.7978846
  %v120 = vmul.f32 %v116, 0.7978846
  %v121 = vtanh.pop %v117
  %v122 = vtanh.pop %v118
  %v123 = vtanh.pop %v119
  %v124 = vtanh.pop %v120
  %v125 = vadd.f32 %v121, 1.0
  %v126 = vadd.f32 %v122, 1.0
  %v127 = vadd.f32 %v123, 1.0
  %v128 = vadd.f32 %v124, 1.0
  %v129 = vmul.f32 %v125, 0.5
  %v130 = vmul.f32 %v126, 0.5
  %v131 = vmul.f32 %v127, 0.5
  %v132 = vmul.f32 %v128, 0.5
  %v133 = vmul.f32 %v97, %v129
  %v134 = vmul.f32 %v98, %v130
  %v135 = vmul.f32 %v99, %v131
  %v136 = vmul.f32 %v100, %v132
  %137 = vst [vmem:[%s4] sm:$0xff] %v133
  %138 = vst [vmem:[%s4 + $0x8] sm:$0xff] %v134
  %139 = vst [vmem:[%s4 + $0x10] sm:$0x3] %v135
  %140 = vst [vmem:[%s4 + $0x18] sm:$0x3] %v136
  // Predicated region
  $region18: #{_lambda_.13} parent=0 // pred_check
    _
  $region19: #{_lambda_.13} parent=0 // pred_check_branch
    %142 = sbr.rel (0) target = $region21
  $region20: #{_lambda_.13} parent=0 // pred_region
    _
  $region21: #{_lambda_.13} parent=0 // pred_fallthru
    _
  // Predicated region
  $region22: #{_lambda_.13} parent=0 // pred_check
    _
  $region23: #{_lambda_.13} parent=0 // pred_check_branch
    %144 = sbr.rel (0) target = $region25
  $region24: #{_lambda_.13} parent=0 // pred_region
    _
  $region25: #{_lambda_.13} parent=0 // pred_fallthru
    _

// kernel: _lambda_.8
$region0: #{_lambda_.8}
  #allocation0 [shape = 'u32[]', space=smem, size = 0x4, offset = 0x4, fixed_abs, tag = 'smem constant byte address 0x4 - core index']
  #allocation1 [shape = 'u32[144,128]{1,0:T(1,128)}', space=vmem, size = 0x12000, scoped, tag = 'internal scratch']
  %s0 = inlined_call_operand.vmem [shape: f32[2,256], index: 0, kind: input, shape index: {}]
  %s1 = inlined_call_operand.vmem [shape: f32[5,2], index: 1, kind: input, shape index: {}]
  %s2 = inlined_call_operand.vmem [shape: f32[5,1], index: 2, kind: input, shape index: {}]
  %s3 = inlined_call_operand.vmem [shape: f32[5,256], index: 3, kind: output, shape index: {}]
  %s4 = sld [smem:[#allocation0]]
  $region22: #{_lambda_.8} parent=0
    _
  %s6 = ssub.s32 1, %s4
  %s7 = scalar_select 0, %s6, %s4
  // Predicated region
  $region2: #{_lambda_.8} parent=0 // pred_check
    _
  $region3: #{_lambda_.8} parent=0 // pred_check_branch
    %9 = sbr.rel (0) target = $region5
  $region4: #{_lambda_.8} parent=0 // pred_region
    _
  $region5: #{_lambda_.8} parent=0 // pred_fallthru
    _
  // Predicated region
  $region6: #{_lambda_.8} parent=0 // pred_check
    _
  $region7: #{_lambda_.8} parent=0 // pred_check_branch
    %11 = sbr.rel (0) target = $region9
  $region8: #{_lambda_.8} parent=0 // pred_region
    _
  $region9: #{_lambda_.8} parent=0 // pred_fallthru
    _
  // Predicated region
  $region10: #{_lambda_.8} parent=0 // pred_check
    _
  $region11: #{_lambda_.8} parent=0 // pred_check_branch
    %13 = sbr.rel (0) target = $region13
  $region12: #{_lambda_.8} parent=0 // pred_region
    _
  $region13: #{_lambda_.8} parent=0 // pred_fallthru
    _
  %v15 = vld [vmem:[%s1] sm:$0x1f]
  %v16 = vpack.c.bf16 %v15, %v15
  %v17 = vld [vmem:[%s0] sm:$0xf]
  %v20 = vunpack.c.l.s4 1983009808
  %v21 = vunpack.c.0.s8 %v20
  %v22 = vlaneseq
  %v23 = vshrl.u32 %v22, 7
  %v24 = vsub.s32 %v21, %v23
  %v25 = vrot.slane %v17, %v24
  %v26 = vcombine.high %v25, %v25
  %v29 = vpack.c.bf16 %v25, %v25
  %v30 = vpack.c.bf16 %v26, %v26
  %v31 = vld [vmem:[%s2] sm:$0x1f]
  %33 = vset.pattern.permute.xlu0 0
  %34 = vperm.xlu0 %33, %v31
  %v35 = vpop.permute.xlu0 %34
  %vm37 = vcmask 15360
  %v39 = vsel %vm37, %v16, 0
  %vm41 = vcmask 1040384
  %v43 = vsel %vm41, %v29, 0
  %v46 = vsel %vm41, %v30, 0
  %48 = vmatprep.subr.bf16.mxu0 %v46
  %49 = vmatpush1.bf16.msra.mxu0 %v43
  %50 = vmatprep.subr.bf16.mxu0 0
  %51 = vmatpush1.bf16.msra.mxu0 0
  %52 = vmatprep.subr.bf16.mxu0 0
  %53 = vmatpush1.bf16.msra.mxu0 0
  %54 = vmatprep.subr.bf16.mxu0 0
  %55 = vmatpush1.bf16.msra.mxu0 0
  %56 = vmatprep.subr.bf16.mxu0 0
  %57 = vmatpush1.bf16.msra.mxu0 0
  %58 = vmatprep.subr.bf16.mxu0 0
  %59 = vmatpush1.bf16.msra.mxu0 0
  %60 = vmatprep.subr.bf16.mxu0 0
  %61 = vmatpush1.bf16.msra.mxu0 0
  %62 = vmatprep.subr.bf16.mxu0 0
  %63 = vmatpush1.bf16.msra.mxu0 0
  %64 = vmatprep.subr.bf16.mxu0 0
  %65 = vmatpush1.bf16.msra.mxu0 0
  %66 = vmatprep.subr.bf16.mxu0 0
  %67 = vmatpush1.bf16.msra.mxu0 0
  %68 = vmatprep.subr.bf16.mxu0 0
  %69 = vmatpush1.bf16.msra.mxu0 0
  %70 = vmatprep.subr.bf16.mxu0 0
  %71 = vmatpush1.bf16.msra.mxu0 0
  %72 = vmatprep.subr.bf16.mxu0 0
  %73 = vmatpush1.bf16.msra.mxu0 0
  %74 = vmatprep.subr.bf16.mxu0 0
  %75 = vmatpush1.bf16.msra.mxu0 0
  %76 = vmatprep.subr.bf16.mxu0 0
  %77 = vmatpush1.bf16.msra.mxu0 0
  %78 = vmatprep.subr.bf16.mxu0 0
  %79 = vmatpush1.bf16.msra.mxu0 0
  %80 = vmatprep.mubr.bf16.mxu0 0
  %81 = vmatmul.mubr.bf16.gmra.mrb[0].mxu0 %v39
  %v82 = vpop.f32.mrb[0].mxu0
  %v83 = vadd.f32 %v35, %v82
  %v84 = vpop.f32.mrb[0].mxu0
  %v85 = vadd.f32 %v35, %v84
  %v86 = vpop.f32.mrb[0].mxu0
  %v87 = vpop.f32.mrb[0].mxu0
  %88 = vdwg.mxu0
  %89 = vst [vmem:[%s3] sm:$0x1f] %v83
  %90 = vst [vmem:[%s3 + $0x8] sm:$0x1f] %v85
  // Predicated region
  $region14: #{_lambda_.8} parent=0 // pred_check
    _
  $region15: #{_lambda_.8} parent=0 // pred_check_branch
    %92 = sbr.rel (0) target = $region17
  $region16: #{_lambda_.8} parent=0 // pred_region
    _
  $region17: #{_lambda_.8} parent=0 // pred_fallthru
    _
  // Predicated region
  $region18: #{_lambda_.8} parent=0 // pred_check
    _
  $region19: #{_lambda_.8} parent=0 // pred_check_branch
    %94 = sbr.rel (0) target = $region21
  $region20: #{_lambda_.8} parent=0 // pred_region
    _
  $region21: #{_lambda_.8} parent=0 // pred_fallthru
    _

// kernel: _lambda_.15
$region0: #{_lambda_.15}
  #allocation0 [shape = 'u32[]', space=smem, size = 0x4, offset = 0x4, fixed_abs, tag = 'smem constant byte address 0x4 - core index']
  #allocation1 [shape = 'u32[144,128]{1,0:T(1,128)}', space=vmem, size = 0x12000, scoped, tag = 'internal scratch']
  %s0 = inlined_call_operand.vmem [shape: f32[10,256], index: 0, kind: input, shape index: {}]
  %s1 = inlined_call_operand.vmem [shape: f32[128,10], index: 1, kind: input, shape index: {}]
  %s2 = inlined_call_operand.vmem [shape: f32[128,1], index: 2, kind: input, shape index: {}]
  %s3 = inlined_call_operand.vmem [shape: f32[3,128], index: 3, kind: input, shape index: {}]
  %s4 = inlined_call_operand.vmem [shape: f32[3,1], index: 4, kind: input, shape index: {}]
  %s5 = inlined_call_operand.vmem [shape: f32[3,256], index: 5, kind: output, shape index: {}]
  %s6 = sld [smem:[#allocation0]]
  $region30: #{_lambda_.15} parent=0
    _
  %s8 = ssub.s32 1, %s6
  %s9 = scalar_select 0, %s8, %s6
  // Predicated region
  $region2: #{_lambda_.15} parent=0 // pred_check
    _
  $region3: #{_lambda_.15} parent=0 // pred_check_branch
    %11 = sbr.rel (0) target = $region5
  $region4: #{_lambda_.15} parent=0 // pred_region
    _
  $region5: #{_lambda_.15} parent=0 // pred_fallthru
    _
  // Predicated region
  $region6: #{_lambda_.15} parent=0 // pred_check
    _
  $region7: #{_lambda_.15} parent=0 // pred_check_branch
    %13 = sbr.rel (0) target = $region9
  $region8: #{_lambda_.15} parent=0 // pred_region
    _
  $region9: #{_lambda_.15} parent=0 // pred_fallthru
    _
  // Predicated region
  $region10: #{_lambda_.15} parent=0 // pred_check
    _
  $region11: #{_lambda_.15} parent=0 // pred_check_branch
    %15 = sbr.rel (0) target = $region13
  $region12: #{_lambda_.15} parent=0 // pred_region
    _
  $region13: #{_lambda_.15} parent=0 // pred_fallthru
    _
  // Predicated region
  $region14: #{_lambda_.15} parent=0 // pred_check
    _
  $region15: #{_lambda_.15} parent=0 // pred_check_branch
    %17 = sbr.rel (0) target = $region17
  $region16: #{_lambda_.15} parent=0 // pred_region
    _
  $region17: #{_lambda_.15} parent=0 // pred_fallthru
    _
  // Predicated region
  $region18: #{_lambda_.15} parent=0 // pred_check
    _
  $region19: #{_lambda_.15} parent=0 // pred_check_branch
    %19 = sbr.rel (0) target = $region21
  $region20: #{_lambda_.15} parent=0 // pred_region
    _
  $region21: #{_lambda_.15} parent=0 // pred_fallthru
    _
  %v21 = vld [vmem:[%s0] sm:$0xff]
  %v22 = vld [vmem:[%s0 + $0x8] sm:$0xff]
  %v23 = vld [vmem:[%s0 + $0x10] sm:$0x3]
  %v24 = vld [vmem:[%s0 + $0x18] sm:$0x3]
  %v25 = vld [vmem:[%s1] sm:$0xff]
  %v26 = vld [vmem:[%s1 + $0x8] sm:$0xff]
  %v27 = vld [vmem:[%s1 + $0x10] sm:$0xff]
  %v28 = vld [vmem:[%s1 + $0x18] sm:$0xff]
  %v29 = vld [vmem:[%s1 + $0x20] sm:$0xff]
  %v30 = vld [vmem:[%s1 + $0x28] sm:$0xff]
  %v31 = vld [vmem:[%s1 + $0x30] sm:$0xff]
  %v32 = vld [vmem:[%s1 + $0x38] sm:$0xff]
  %v33 = vld [vmem:[%s1 + $0x40] sm:$0xff]
  %v34 = vld [vmem:[%s1 + $0x48] sm:$0xff]
  %v35 = vld [vmem:[%s1 + $0x50] sm:$0xff]
  %v36 = vld [vmem:[%s1 + $0x58] sm:$0xff]
  %v37 = vld [vmem:[%s1 + $0x60] sm:$0xff]
  %v38 = vld [vmem:[%s1 + $0x68] sm:$0xff]
  %v39 = vld [vmem:[%s1 + $0x70] sm:$0xff]
  %v40 = vld [vmem:[%s1 + $0x78] sm:$0xff]
  %v41 = vpack.c.bf16 %v26, %v25
  %v42 = vpack.c.bf16 %v28, %v27
  %v43 = vpack.c.bf16 %v30, %v29
  %v44 = vpack.c.bf16 %v32, %v31
  %v45 = vpack.c.bf16 %v34, %v33
  %v46 = vpack.c.bf16 %v36, %v35
  %v47 = vpack.c.bf16 %v38, %v37
  %v48 = vpack.c.bf16 %v40, %v39
  %v49 = vpack.c.bf16 %v23, %v21
  %v50 = vpack.c.bf16 %v24, %v22
  %v51 = vld [vmem:[%s2] sm:$0xff]
  %v52 = vld [vmem:[%s2 + $0x8] sm:$0xff]
  %v53 = vld [vmem:[%s2 + $0x10] sm:$0xff]
  %v54 = vld [vmem:[%s2 + $0x18] sm:$0xff]
  %v55 = vld [vmem:[%s2 + $0x20] sm:$0xff]
  %v56 = vld [vmem:[%s2 + $0x28] sm:$0xff]
  %v57 = vld [vmem:[%s2 + $0x30] sm:$0xff]
  %v58 = vld [vmem:[%s2 + $0x38] sm:$0xff]
  %v59 = vld [vmem:[%s2 + $0x40] sm:$0xff]
  %v60 = vld [vmem:[%s2 + $0x48] sm:$0xff]
  %v61 = vld [vmem:[%s2 + $0x50] sm:$0xff]
  %v62 = vld [vmem:[%s2 + $0x58] sm:$0xff]
  %v63 = vld [vmem:[%s2 + $0x60] sm:$0xff]
  %v64 = vld [vmem:[%s2 + $0x68] sm:$0xff]
  %v65 = vld [vmem:[%s2 + $0x70] sm:$0xff]
  %v66 = vld [vmem:[%s2 + $0x78] sm:$0xff]
  %68 = vset.pattern.permute.xlu0 0
  %69 = vperm.xlu0 %68, %v51
  %v70 = vpop.permute.xlu0 %69
  %73 = vset.pattern.permute.xlu0 0
  %74 = vperm.xlu0 %73, %v52
  %v75 = vpop.permute.xlu0 %74
  %78 = vset.pattern.permute.xlu0 0
  %79 = vperm.xlu0 %78, %v53
  %v80 = vpop.permute.xlu0 %79
  %83 = vset.pattern.permute.xlu0 0
  %84 = vperm.xlu0 %83, %v54
  %v85 = vpop.permute.xlu0 %84
  %88 = vset.pattern.permute.xlu0 0
  %89 = vperm.xlu0 %88, %v55
  %v90 = vpop.permute.xlu0 %89
  %93 = vset.pattern.permute.xlu0 0
  %94 = vperm.xlu0 %93, %v56
  %v95 = vpop.permute.xlu0 %94
  %98 = vset.pattern.permute.xlu0 0
  %99 = vperm.xlu0 %98, %v57
  %v100 = vpop.permute.xlu0 %99
  %103 = vset.pattern.permute.xlu0 0
  %104 = vperm.xlu0 %103, %v58
  %v105 = vpop.permute.xlu0 %104
  %108 = vset.pattern.permute.xlu0 0
  %109 = vperm.xlu0 %108, %v59
  %v110 = vpop.permute.xlu0 %109
  %113 = vset.pattern.permute.xlu0 0
  %114 = vperm.xlu0 %113, %v60
  %v115 = vpop.permute.xlu0 %114
  %118 = vset.pattern.permute.xlu0 0
  %119 = vperm.xlu0 %118, %v61
  %v120 = vpop.permute.xlu0 %119
  %123 = vset.pattern.permute.xlu0 0
  %124 = vperm.xlu0 %123, %v62
  %v125 = vpop.permute.xlu0 %124
  %128 = vset.pattern.permute.xlu0 0
  %129 = vperm.xlu0 %128, %v63
  %v130 = vpop.permute.xlu0 %129
  %133 = vset.pattern.permute.xlu0 0
  %134 = vperm.xlu0 %133, %v64
  %v135 = vpop.permute.xlu0 %134
  %138 = vset.pattern.permute.xlu0 0
  %139 = vperm.xlu0 %138, %v65
  %v140 = vpop.permute.xlu0 %139
  %143 = vset.pattern.permute.xlu0 0
  %144 = vperm.xlu0 %143, %v66
  %v145 = vpop.permute.xlu0 %144
  %vm147 = vcmask 80896
  %v149 = vsel %vm147, %v41, 0
  %v152 = vsel %vm147, %v42, 0
  %v155 = vsel %vm147, %v43, 0
  %v158 = vsel %vm147, %v44, 0
  %v161 = vsel %vm147, %v45, 0
  %v164 = vsel %vm147, %v46, 0
  %v167 = vsel %vm147, %v47, 0
  %v170 = vsel %vm147, %v48, 0
  %vm172 = vcmask 1044480
  %v174 = vsel %vm172, %v49, 0
  %v177 = vsel %vm172, %v50, 0
  %179 = vmatprep.subr.bf16.mxu0 %v177
  %180 = vmatpush1.bf16.msra.mxu0 %v174
  %181 = vmatprep.subr.bf16.mxu0 0
  %182 = vmatpush1.bf16.msra.mxu0 0
  %183 = vmatprep.subr.bf16.mxu0 0
  %184 = vmatpush1.bf16.msra.mxu0 0
  %185 = vmatprep.subr.bf16.mxu0 0
  %186 = vmatpush1.bf16.msra.mxu0 0
  %187 = vmatprep.subr.bf16.mxu0 0
  %188 = vmatpush1.bf16.msra.mxu0 0
  %189 = vmatprep.subr.bf16.mxu0 0
  %190 = vmatpush1.bf16.msra.mxu0 0
  %191 = vmatprep.subr.bf16.mxu0 0
  %192 = vmatpush1.bf16.msra.mxu0 0
  %193 = vmatprep.subr.bf16.mxu0 0
  %194 = vmatpush1.bf16.msra.mxu0 0
  %195 = vmatprep.subr.bf16.mxu0 0
  %196 = vmatpush1.bf16.msra.mxu0 0
  %197 = vmatprep.subr.bf16.mxu0 0
  %198 = vmatpush1.bf16.msra.mxu0 0
  %199 = vmatprep.subr.bf16.mxu0 0
  %200 = vmatpush1.bf16.msra.mxu0 0
  %201 = vmatprep.subr.bf16.mxu0 0
  %202 = vmatpush1.bf16.msra.mxu0 0
  %203 = vmatprep.subr.bf16.mxu0 0
  %204 = vmatpush1.bf16.msra.mxu0 0
  %205 = vmatprep.subr.bf16.mxu0 0
  %206 = vmatpush1.bf16.msra.mxu0 0
  %207 = vmatprep.subr.bf16.mxu0 0
  %208 = vmatpush1.bf16.msra.mxu0 0
  %209 = vmatprep.subr.bf16.mxu0 0
  %210 = vmatpush1.bf16.msra.mxu0 0
  %211 = vmatprep.mubr.bf16.mxu0 0
  %212 = vmatmul.mubr.bf16.gmra.mrb[0].mxu0 %v149
  %v213 = vpop.f32.mrb[0].mxu0
  %v214 = vadd.f32 %v70, %v213
  %v215 = vpop.f32.mrb[0].mxu0
  %v216 = vadd.f32 %v70, %v215
  %v217 = vpop.f32.mrb[0].mxu0
  %v218 = vadd.f32 %v75, %v217
  %v219 = vpop.f32.mrb[0].mxu0
  %v220 = vadd.f32 %v75, %v219
  %221 = vmatprep.mubr.bf16.mxu0 0
  %222 = vmatmul.mubr.bf16.gmra.mrb[0].mxu0 %v152
  %v223 = vpop.f32.mrb[0].mxu0
  %v224 = vadd.f32 %v80, %v223
  %v225 = vpop.f32.mrb[0].mxu0
  %v226 = vadd.f32 %v80, %v225
  %v227 = vpop.f32.mrb[0].mxu0
  %v228 = vadd.f32 %v85, %v227
  %v229 = vpop.f32.mrb[0].mxu0
  %v230 = vadd.f32 %v85, %v229
  %231 = vmatprep.mubr.bf16.mxu0 0
  %232 = vmatmul.mubr.bf16.gmra.mrb[0].mxu0 %v155
  %v233 = vpop.f32.mrb[0].mxu0
  %v234 = vadd.f32 %v90, %v233
  %v235 = vpop.f32.mrb[0].mxu0
  %v236 = vadd.f32 %v90, %v235
  %v237 = vpop.f32.mrb[0].mxu0
  %v238 = vadd.f32 %v95, %v237
  %v239 = vpop.f32.mrb[0].mxu0
  %v240 = vadd.f32 %v95, %v239
  %241 = vmatprep.mubr.bf16.mxu0 0
  %242 = vmatmul.mubr.bf16.gmra.mrb[0].mxu0 %v158
  %v243 = vpop.f32.mrb[0].mxu0
  %v244 = vadd.f32 %v100, %v243
  %v245 = vpop.f32.mrb[0].mxu0
  %v246 = vadd.f32 %v100, %v245
  %v247 = vpop.f32.mrb[0].mxu0
  %v248 = vadd.f32 %v105, %v247
  %v249 = vpop.f32.mrb[0].mxu0
  %v250 = vadd.f32 %v105, %v249
  %251 = vmatprep.mubr.bf16.mxu0 0
  %252 = vmatmul.mubr.bf16.gmra.mrb[0].mxu0 %v161
  %v253 = vpop.f32.mrb[0].mxu0
  %v254 = vadd.f32 %v110, %v253
  %v255 = vpop.f32.mrb[0].mxu0
  %v256 = vadd.f32 %v110, %v255
  %v257 = vpop.f32.mrb[0].mxu0
  %v258 = vadd.f32 %v115, %v257
  %v259 = vpop.f32.mrb[0].mxu0
  %v260 = vadd.f32 %v115, %v259
  %261 = vmatprep.mubr.bf16.mxu0 0
  %262 = vmatmul.mubr.bf16.gmra.mrb[0].mxu0 %v164
  %v263 = vpop.f32.mrb[0].mxu0
  %v264 = vadd.f32 %v120, %v263
  %v265 = vpop.f32.mrb[0].mxu0
  %v266 = vadd.f32 %v120, %v265
  %v267 = vpop.f32.mrb[0].mxu0
  %v268 = vadd.f32 %v125, %v267
  %v269 = vpop.f32.mrb[0].mxu0
  %v270 = vadd.f32 %v125, %v269
  %271 = vmatprep.mubr.bf16.mxu0 0
  %272 = vmatmul.mubr.bf16.gmra.mrb[0].mxu0 %v167
  %v273 = vpop.f32.mrb[0].mxu0
  %v274 = vadd.f32 %v130, %v273
  %v275 = vpop.f32.mrb[0].mxu0
  %v276 = vadd.f32 %v130, %v275
  %v277 = vpop.f32.mrb[0].mxu0
  %v278 = vadd.f32 %v135, %v277
  %v279 = vpop.f32.mrb[0].mxu0
  %v280 = vadd.f32 %v135, %v279
  %281 = vmatprep.mubr.bf16.mxu0 0
  %282 = vmatmul.mubr.bf16.gmra.mrb[0].mxu0 %v170
  %v283 = vpop.f32.mrb[0].mxu0
  %v284 = vadd.f32 %v140, %v283
  %v285 = vpop.f32.mrb[0].mxu0
  %v286 = vadd.f32 %v140, %v285
  %v287 = vpop.f32.mrb[0].mxu0
  %v288 = vadd.f32 %v145, %v287
  %v289 = vpop.f32.mrb[0].mxu0
  %v290 = vadd.f32 %v145, %v289
  %291 = vdwg.mxu0
  %v292 = vmul.f32 %v214, %v214
  %v293 = vmul.f32 %v216, %v216
  %v294 = vmul.f32 %v218, %v218
  %v295 = vmul.f32 %v220, %v220
  %v296 = vmul.f32 %v224, %v224
  %v297 = vmul.f32 %v226, %v226
  %v298 = vmul.f32 %v228, %v228
  %v299 = vmul.f32 %v230, %v230
  %v300 = vmul.f32 %v234, %v234
  %v301 = vmul.f32 %v236, %v236
  %v302 = vmul.f32 %v238, %v238
  %v303 = vmul.f32 %v240, %v240
  %v304 = vmul.f32 %v244, %v244
  %v305 = vmul.f32 %v246, %v246
  %v306 = vmul.f32 %v248, %v248
  %v307 = vmul.f32 %v250, %v250
  %v308 = vmul.f32 %v254, %v254
  %v309 = vmul.f32 %v256, %v256
  %v310 = vmul.f32 %v258, %v258
  %v311 = vmul.f32 %v260, %v260
  %v312 = vmul.f32 %v264, %v264
  %v313 = vmul.f32 %v266, %v266
  %v314 = vmul.f32 %v268, %v268
  %v315 = vmul.f32 %v270, %v270
  %v316 = vmul.f32 %v274, %v274
  %v317 = vmul.f32 %v276, %v276
  %v318 = vmul.f32 %v278, %v278
  %v319 = vmul.f32 %v280, %v280
  %v320 = vmul.f32 %v284, %v284
  %v321 = vmul.f32 %v286, %v286
  %v322 = vmul.f32 %v288, %v288
  %v323 = vmul.f32 %v290, %v290
  %v324 = vmul.f32 %v214, %v292
  %v325 = vmul.f32 %v216, %v293
  %v326 = vmul.f32 %v218, %v294
  %v327 = vmul.f32 %v220, %v295
  %v328 = vmul.f32 %v224, %v296
  %v329 = vmul.f32 %v226, %v297
  %v330 = vmul.f32 %v228, %v298
  %v331 = vmul.f32 %v230, %v299
  %v332 = vmul.f32 %v234, %v300
  %v333 = vmul.f32 %v236, %v301
  %v334 = vmul.f32 %v238, %v302
  %v335 = vmul.f32 %v240, %v303
  %v336 = vmul.f32 %v244, %v304
  %v337 = vmul.f32 %v246, %v305
  %v338 = vmul.f32 %v248, %v306
  %v339 = vmul.f32 %v250, %v307
  %v340 = vmul.f32 %v254, %v308
  %v341 = vmul.f32 %v256, %v309
  %v342 = vmul.f32 %v258, %v310
  %v343 = vmul.f32 %v260, %v311
  %v344 = vmul.f32 %v264, %v312
  %v345 = vmul.f32 %v266, %v313
  %v346 = vmul.f32 %v268, %v314
  %v347 = vmul.f32 %v270, %v315
  %v348 = vmul.f32 %v274, %v316
  %v349 = vmul.f32 %v276, %v317
  %v350 = vmul.f32 %v278, %v318
  %v351 = vmul.f32 %v280, %v319
  %v352 = vmul.f32 %v284, %v320
  %v353 = vmul.f32 %v286, %v321
  %v354 = vmul.f32 %v288, %v322
  %v355 = vmul.f32 %v290, %v323
  %v356 = vmul.f32 %v324, 0.044715
  %v357 = vmul.f32 %v325, 0.044715
  %v358 = vmul.f32 %v326, 0.044715
  %v359 = vmul.f32 %v327, 0.044715
  %v360 = vmul.f32 %v328, 0.044715
  %v361 = vmul.f32 %v329, 0.044715
  %v362 = vmul.f32 %v330, 0.044715
  %v363 = vmul.f32 %v331, 0.044715
  %v364 = vmul.f32 %v332, 0.044715
  %v365 = vmul.f32 %v333, 0.044715
  %v366 = vmul.f32 %v334, 0.044715
  %v367 = vmul.f32 %v335, 0.044715
  %v368 = vmul.f32 %v336, 0.044715
  %v369 = vmul.f32 %v337, 0.044715
  %v370 = vmul.f32 %v338, 0.044715
  %v371 = vmul.f32 %v339, 0.044715
  %v372 = vmul.f32 %v340, 0.044715
  %v373 = vmul.f32 %v341, 0.044715
  %v374 = vmul.f32 %v342, 0.044715
  %v375 = vmul.f32 %v343, 0.044715
  %v376 = vmul.f32 %v344, 0.044715
  %v377 = vmul.f32 %v345, 0.044715
  %v378 = vmul.f32 %v346, 0.044715
  %v379 = vmul.f32 %v347, 0.044715
  %v380 = vmul.f32 %v348, 0.044715
  %v381 = vmul.f32 %v349, 0.044715
  %v382 = vmul.f32 %v350, 0.044715
  %v383 = vmul.f32 %v351, 0.044715
  %v384 = vmul.f32 %v352, 0.044715
  %v385 = vmul.f32 %v353, 0.044715
  %v386 = vmul.f32 %v354, 0.044715
  %v387 = vmul.f32 %v355, 0.044715
  %v388 = vadd.f32 %v214, %v356
  %v389 = vadd.f32 %v216, %v357
  %v390 = vadd.f32 %v218, %v358
  %v391 = vadd.f32 %v220, %v359
  %v392 = vadd.f32 %v224, %v360
  %v393 = vadd.f32 %v226, %v361
  %v394 = vadd.f32 %v228, %v362
  %v395 = vadd.f32 %v230, %v363
  %v396 = vadd.f32 %v234, %v364
  %v397 = vadd.f32 %v236, %v365
  %v398 = vadd.f32 %v238, %v366
  %v399 = vadd.f32 %v240, %v367
  %v400 = vadd.f32 %v244, %v368
  %v401 = vadd.f32 %v246, %v369
  %v402 = vadd.f32 %v248, %v370
  %v403 = vadd.f32 %v250, %v371
  %v404 = vadd.f32 %v254, %v372
  %v405 = vadd.f32 %v256, %v373
  %v406 = vadd.f32 %v258, %v374
  %v407 = vadd.f32 %v260, %v375
  %v408 = vadd.f32 %v264, %v376
  %v409 = vadd.f32 %v266, %v377
  %v410 = vadd.f32 %v268, %v378
  %v411 = vadd.f32 %v270, %v379
  %v412 = vadd.f32 %v274, %v380
  %v413 = vadd.f32 %v276, %v381
  %v414 = vadd.f32 %v278, %v382
  %v415 = vadd.f32 %v280, %v383
  %v416 = vadd.f32 %v284, %v384
  %v417 = vadd.f32 %v286, %v385
  %v418 = vadd.f32 %v288, %v386
  %v419 = vadd.f32 %v290, %v387
  %v420 = vmul.f32 %v388, 0.7978846
  %v421 = vmul.f32 %v389, 0.7978846
  %v422 = vmul.f32 %v390, 0.7978846
  %v423 = vmul.f32 %v391, 0.7978846
  %v424 = vmul.f32 %v392, 0.7978846
  %v425 = vmul.f32 %v393, 0.7978846
  %v426 = vmul.f32 %v394, 0.7978846
  %v427 = vmul.f32 %v395, 0.7978846
  %v428 = vmul.f32 %v396, 0.7978846
  %v429 = vmul.f32 %v397, 0.7978846
  %v430 = vmul.f32 %v398, 0.7978846
  %v431 = vmul.f32 %v399, 0.7978846
  %v432 = vmul.f32 %v400, 0.7978846
  %v433 = vmul.f32 %v401, 0.7978846
  %v434 = vmul.f32 %v402, 0.7978846
  %v435 = vmul.f32 %v403, 0.7978846
  %v436 = vmul.f32 %v404, 0.7978846
  %v437 = vmul.f32 %v405, 0.7978846
  %v438 = vmul.f32 %v406, 0.7978846
  %v439 = vmul.f32 %v407, 0.7978846
  %v440 = vmul.f32 %v408, 0.7978846
  %v441 = vmul.f32 %v409, 0.7978846
  %v442 = vmul.f32 %v410, 0.7978846
  %v443 = vmul.f32 %v411, 0.7978846
  %v444 = vmul.f32 %v412, 0.7978846
  %v445 = vmul.f32 %v413, 0.7978846
  %v446 = vmul.f32 %v414, 0.7978846
  %v447 = vmul.f32 %v415, 0.7978846
  %v448 = vmul.f32 %v416, 0.7978846
  %v449 = vmul.f32 %v417, 0.7978846
  %v450 = vmul.f32 %v418, 0.7978846
  %v451 = vmul.f32 %v419, 0.7978846
  %v452 = vtanh.pop %v420
  %v453 = vtanh.pop %v421
  %v454 = vtanh.pop %v422
  %v455 = vtanh.pop %v423
  %v456 = vtanh.pop %v424
  %v457 = vtanh.pop %v425
  %v458 = vtanh.pop %v426
  %v459 = vtanh.pop %v427
  %v460 = vtanh.pop %v428
  %v461 = vtanh.pop %v429
  %v462 = vtanh.pop %v430
  %v463 = vtanh.pop %v431
  %v464 = vtanh.pop %v432
  %v465 = vtanh.pop %v433
  %v466 = vtanh.pop %v434
  %v467 = vtanh.pop %v435
  %v468 = vtanh.pop %v436
  %v469 = vtanh.pop %v437
  %v470 = vtanh.pop %v438
  %v471 = vtanh.pop %v439
  %v472 = vtanh.pop %v440
  %v473 = vtanh.pop %v441
  %v474 = vtanh.pop %v442
  %v475 = vtanh.pop %v443
  %v476 = vtanh.pop %v444
  %v477 = vtanh.pop %v445
  %v478 = vtanh.pop %v446
  %v479 = vtanh.pop %v447
  %v480 = vtanh.pop %v448
  %v481 = vtanh.pop %v449
  %v482 = vtanh.pop %v450
  %v483 = vtanh.pop %v451
  %v484 = vadd.f32 %v452, 1.0
  %v485 = vadd.f32 %v453, 1.0
  %v486 = vadd.f32 %v454, 1.0
  %v487 = vadd.f32 %v455, 1.0
  %v488 = vadd.f32 %v456, 1.0
  %v489 = vadd.f32 %v457, 1.0
  %v490 = vadd.f32 %v458, 1.0
  %v491 = vadd.f32 %v459, 1.0
  %v492 = vadd.f32 %v460, 1.0
  %v493 = vadd.f32 %v461, 1.0
  %v494 = vadd.f32 %v462, 1.0
  %v495 = vadd.f32 %v463, 1.0
  %v496 = vadd.f32 %v464, 1.0
  %v497 = vadd.f32 %v465, 1.0
  %v498 = vadd.f32 %v466, 1.0
  %v499 = vadd.f32 %v467, 1.0
  %v500 = vadd.f32 %v468, 1.0
  %v501 = vadd.f32 %v469, 1.0
  %v502 = vadd.f32 %v470, 1.0
  %v503 = vadd.f32 %v471, 1.0
  %v504 = vadd.f32 %v472, 1.0
  %v505 = vadd.f32 %v473, 1.0
  %v506 = vadd.f32 %v474, 1.0
  %v507 = vadd.f32 %v475, 1.0
  %v508 = vadd.f32 %v476, 1.0
  %v509 = vadd.f32 %v477, 1.0
  %v510 = vadd.f32 %v478, 1.0
  %v511 = vadd.f32 %v479, 1.0
  %v512 = vadd.f32 %v480, 1.0
  %v513 = vadd.f32 %v481, 1.0
  %v514 = vadd.f32 %v482, 1.0
  %v515 = vadd.f32 %v483, 1.0
  %v516 = vmul.f32 %v484, 0.5
  %v517 = vmul.f32 %v485, 0.5
  %v518 = vmul.f32 %v486, 0.5
  %v519 = vmul.f32 %v487, 0.5
  %v520 = vmul.f32 %v488, 0.5
  %v521 = vmul.f32 %v489, 0.5
  %v522 = vmul.f32 %v490, 0.5
  %v523 = vmul.f32 %v491, 0.5
  %v524 = vmul.f32 %v492, 0.5
  %v525 = vmul.f32 %v493, 0.5
  %v526 = vmul.f32 %v494, 0.5
  %v527 = vmul.f32 %v495, 0.5
  %v528 = vmul.f32 %v496, 0.5
  %v529 = vmul.f32 %v497, 0.5
  %v530 = vmul.f32 %v498, 0.5
  %v531 = vmul.f32 %v499, 0.5
  %v532 = vmul.f32 %v500, 0.5
  %v533 = vmul.f32 %v501, 0.5
  %v534 = vmul.f32 %v502, 0.5
  %v535 = vmul.f32 %v503, 0.5
  %v536 = vmul.f32 %v504, 0.5
  %v537 = vmul.f32 %v505, 0.5
  %v538 = vmul.f32 %v506, 0.5
  %v539 = vmul.f32 %v507, 0.5
  %v540 = vmul.f32 %v508, 0.5
  %v541 = vmul.f32 %v509, 0.5
  %v542 = vmul.f32 %v510, 0.5
  %v543 = vmul.f32 %v511, 0.5
  %v544 = vmul.f32 %v512, 0.5
  %v545 = vmul.f32 %v513, 0.5
  %v546 = vmul.f32 %v514, 0.5
  %v547 = vmul.f32 %v515, 0.5
  %v548 = vmul.f32 %v214, %v516
  %v549 = vmul.f32 %v216, %v517
  %v550 = vmul.f32 %v218, %v518
  %v551 = vmul.f32 %v220, %v519
  %v552 = vmul.f32 %v224, %v520
  %v553 = vmul.f32 %v226, %v521
  %v554 = vmul.f32 %v228, %v522
  %v555 = vmul.f32 %v230, %v523
  %v556 = vmul.f32 %v234, %v524
  %v557 = vmul.f32 %v236, %v525
  %v558 = vmul.f32 %v238, %v526
  %v559 = vmul.f32 %v240, %v527
  %v560 = vmul.f32 %v244, %v528
  %v561 = vmul.f32 %v246, %v529
  %v562 = vmul.f32 %v248, %v530
  %v563 = vmul.f32 %v250, %v531
  %v564 = vmul.f32 %v254, %v532
  %v565 = vmul.f32 %v256, %v533
  %v566 = vmul.f32 %v258, %v534
  %v567 = vmul.f32 %v260, %v535
  %v568 = vmul.f32 %v264, %v536
  %v569 = vmul.f32 %v266, %v537
  %v570 = vmul.f32 %v268, %v538
  %v571 = vmul.f32 %v270, %v539
  %v572 = vmul.f32 %v274, %v540
  %v573 = vmul.f32 %v276, %v541
  %v574 = vmul.f32 %v278, %v542
  %v575 = vmul.f32 %v280, %v543
  %v576 = vmul.f32 %v284, %v544
  %v577 = vmul.f32 %v286, %v545
  %v578 = vmul.f32 %v288, %v546
  %v579 = vmul.f32 %v290, %v547
  %v580 = vld [vmem:[%s3] sm:$0x7]
  %v581 = vpack.c.bf16 %v580, %v580
  %v582 = vpack.c.bf16 %v550, %v548
  %v583 = vpack.c.bf16 %v551, %v549
  %v584 = vpack.c.bf16 %v554, %v552
  %v585 = vpack.c.bf16 %v555, %v553
  %v586 = vpack.c.bf16 %v558, %v556
  %v587 = vpack.c.bf16 %v559, %v557
  %v588 = vpack.c.bf16 %v562, %v560
  %v589 = vpack.c.bf16 %v563, %v561
  %v590 = vpack.c.bf16 %v566, %v564
  %v591 = vpack.c.bf16 %v567, %v565
  %v592 = vpack.c.bf16 %v570, %v568
  %v593 = vpack.c.bf16 %v571, %v569
  %v594 = vpack.c.bf16 %v574, %v572
  %v595 = vpack.c.bf16 %v575, %v573
  %v596 = vpack.c.bf16 %v578, %v576
  %v597 = vpack.c.bf16 %v579, %v577
  %v598 = vld [vmem:[%s4] sm:$0x7]
  %600 = vset.pattern.permute.xlu0 0
  %601 = vperm.xlu0 %600, %v598
  %v602 = vpop.permute.xlu0 %601
  %604 = vmatprep.subr.bf16.mxu0 %v583
  %605 = vmatpush1.bf16.msra.mxu0 %v582
  %606 = vmatprep.subr.bf16.mxu0 %v585
  %607 = vmatpush1.bf16.msra.mxu0 %v584
  %608 = vmatprep.subr.bf16.mxu0 %v587
  %609 = vmatpush1.bf16.msra.mxu0 %v586
  %610 = vmatprep.subr.bf16.mxu0 %v589
  %611 = vmatpush1.bf16.msra.mxu0 %v588
  %612 = vmatprep.subr.bf16.mxu0 %v591
  %613 = vmatpush1.bf16.msra.mxu0 %v590
  %614 = vmatprep.subr.bf16.mxu0 %v593
  %615 = vmatpush1.bf16.msra.mxu0 %v592
  %616 = vmatprep.subr.bf16.mxu0 %v595
  %617 = vmatpush1.bf16.msra.mxu0 %v594
  %618 = vmatprep.subr.bf16.mxu0 %v597
  %619 = vmatpush1.bf16.msra.mxu0 %v596
  %620 = vmatprep.subr.bf16.mxu0 0
  %621 = vmatpush1.bf16.msra.mxu0 0
  %622 = vmatprep.subr.bf16.mxu0 0
  %623 = vmatpush1.bf16.msra.mxu0 0
  %624 = vmatprep.subr.bf16.mxu0 0
  %625 = vmatpush1.bf16.msra.mxu0 0
  %626 = vmatprep.subr.bf16.mxu0 0
  %627 = vmatpush1.bf16.msra.mxu0 0
  %628 = vmatprep.subr.bf16.mxu0 0
  %629 = vmatpush1.bf16.msra.mxu0 0
  %630 = vmatprep.subr.bf16.mxu0 0
  %631 = vmatpush1.bf16.msra.mxu0 0
  %632 = vmatprep.subr.bf16.mxu0 0
  %633 = vmatpush1.bf16.msra.mxu0 0
  %634 = vmatprep.subr.bf16.mxu0 0
  %635 = vmatpush1.bf16.msra.mxu0 0
  %636 = vmatprep.mubr.bf16.mxu0 0
  %637 = vmatmul.mubr.bf16.gmra.mrb[0].mxu0 %v581
  %v638 = vpop.f32.mrb[0].mxu0
  %v639 = vadd.f32 %v602, %v638
  %v640 = vpop.f32.mrb[0].mxu0
  %v641 = vadd.f32 %v602, %v640
  %v642 = vpop.f32.mrb[0].mxu0
  %v643 = vpop.f32.mrb[0].mxu0
  %644 = vdwg.mxu0
  %v645 = vxor.u32 %v639, 2147483648
  %v646 = vxor.u32 %v641, 2147483648
  %v647 = vmul.f32 %v645, 1.442695
  %v648 = vpow.pop %v647
  %v649 = vmul.f32 %v646, 1.442695
  %v650 = vpow.pop %v649
  %v651 = vadd.f32 %v648, 1.0
  %v652 = vadd.f32 %v650, 1.0
  %v653 = vrcp.pop %v651
  %v654 = vmul.f32 1.0, %v653
  %v655 = vrcp.pop %v652
  %v656 = vmul.f32 1.0, %v655
  %v659 = vcombine.low %v654, %v656
  %661 = vst [vmem:[%s5] sm:$0x77] %v659
  // Predicated region
  $region22: #{_lambda_.15} parent=0 // pred_check
    _
  $region23: #{_lambda_.15} parent=0 // pred_check_branch
    %663 = sbr.rel (0) target = $region25
  $region24: #{_lambda_.15} parent=0 // pred_region
    _
  $region25: #{_lambda_.15} parent=0 // pred_fallthru
    _
  // Predicated region
  $region26: #{_lambda_.15} parent=0 // pred_check
    _
  $region27: #{_lambda_.15} parent=0 // pred_check_branch
    %665 = sbr.rel (0) target = $region29
  $region28: #{_lambda_.15} parent=0 // pred_region
    _
  $region29: #{_lambda_.15} parent=0 // pred_fallthru
    _

// kernel: reverse.9
$region0: #{reverse.9}
  %s0 = inlined_call_operand.vmem [shape: f32[1,5,16,7], index: 0, kind: input, shape index: {}]
  %s1 = inlined_call_operand.vmem [shape: f32[1,5,16,7], index: 1, kind: output, shape index: {}]
  $region1: #{reverse.9} parent=0
    #allocation0 [shape = 'u8[40960]{0}', space=vmem, size = 0xa000, scoped, tag = 'operand span for operand 0']
    #allocation1 [shape = 'u8[20480]{0}', space=vmem, size = 0x5000, scoped, tag = 'operand span for operand 1']
    %s2 = scalar_lea.vmem [#allocation0], 8
    // Predicated region
    $region2: #{reverse.9} parent=1 // pred_check
      _
    $region3: #{reverse.9} parent=1 // pred_check_branch
      %4 = sbr.rel (0) target = $region5
    $region4: #{reverse.9} parent=1 // pred_region
      // Predicated region
      $region6: #{reverse.9} parent=4 // pred_check
        _
      $region7: #{reverse.9} parent=4 // pred_check_branch
        %6 = sbr.rel (0) target = $region9
      $region8: #{reverse.9} parent=4 // pred_region
        // Predicated region
        $region21: #{reverse.9} parent=8 // pred_check
          _
        $region22: #{reverse.9} parent=8 // pred_check_branch
          %29 = sbr.rel (0) target = $region24
        $region23: #{reverse.9} parent=8 // pred_region
          loop: start=0, step=1, limit=1
          $region25: #{reverse.9} parent=23 // loop_pre_header
            _
          $region26: #{reverse.9} parent=23 // loop_header
            %s31 = sphi 0, %s35
            %p32 = scmp.ge.s32.totalorder %s31, 1
            %s36 = sphi %s0, %s0
            %s37 = sphi %s2, %s2
          $region27: #{reverse.9} parent=23 // loop_header_branch
            %34 = sbr.rel (%p32) target = $region31
          $region28: #{reverse.9} parent=23 // loop_body
            %v38 = vld [vmem:[%s36] sm:$0xff]
            %39 = vst [vmem:[%s37] sm:$0xff] %v38
            %v40 = vld [vmem:[%s36 + $0x8] sm:$0xff]
            %41 = vst [vmem:[%s37 + $0x10] sm:$0xff] %v40
            %v42 = vld [vmem:[%s36 + $0x10] sm:$0xff]
            %43 = vst [vmem:[%s37 + $0x20] sm:$0xff] %v42
            %v44 = vld [vmem:[%s36 + $0x18] sm:$0xff]
            %45 = vst [vmem:[%s37 + $0x30] sm:$0xff] %v44
            %v46 = vld [vmem:[%s36 + $0x20] sm:$0xff]
            %47 = vst [vmem:[%s37 + $0x40] sm:$0xff] %v46
          $region29: #{reverse.9} parent=23 // loop_footer
            %s35 = sadd.s32 1, %s31
          $region30: #{reverse.9} parent=23 // loop_footer_branch
            %30 = sbr.rel target = $region26
          $region31: #{reverse.9} parent=23 // loop_exit
            _
        $region24: #{reverse.9} parent=8 // pred_fallthru
          _
        // Predicated region
        $region32: #{reverse.9} parent=8 // pred_check
          _
        $region33: #{reverse.9} parent=8 // pred_check_branch
          %49 = sbr.rel target = $region35
        $region34: #{reverse.9} parent=8 // pred_region
          _
        $region35: #{reverse.9} parent=8 // pred_fallthru
          _
      $region9: #{reverse.9} parent=4 // pred_fallthru
        _
      // Predicated region
      $region10: #{reverse.9} parent=4 // pred_check
        _
      $region11: #{reverse.9} parent=4 // pred_check_branch
        %8 = sbr.rel target = $region13
      $region12: #{reverse.9} parent=4 // pred_region
        loop: start=0, step=1, limit=1
        $region14: #{reverse.9} parent=12 // loop_pre_header
          _
        $region15: #{reverse.9} parent=12 // loop_header
          %s11 = sphi 0, %s15
          %p12 = scmp.ge.s32.totalorder %s11, 1
          %s16 = sphi %s0, %s0
          %s17 = sphi %s2, %s2
        $region16: #{reverse.9} parent=12 // loop_header_branch
          %14 = sbr.rel (%p12) target = $region20
        $region17: #{reverse.9} parent=12 // loop_body
          %v18 = vld [vmem:[%s16] sm:$0xff]
          %19 = vst [vmem:[%s17] sm:$0xff] %v18
          %v20 = vld [vmem:[%s16 + $0x8] sm:$0xff]
          %21 = vst [vmem:[%s17 + $0x10] sm:$0xff] %v20
          %v22 = vld [vmem:[%s16 + $0x10] sm:$0xff]
          %23 = vst [vmem:[%s17 + $0x20] sm:$0xff] %v22
          %v24 = vld [vmem:[%s16 + $0x18] sm:$0xff]
          %25 = vst [vmem:[%s17 + $0x30] sm:$0xff] %v24
          %v26 = vld [vmem:[%s16 + $0x20] sm:$0xff]
          %27 = vst [vmem:[%s17 + $0x40] sm:$0xff] %v26
        $region18: #{reverse.9} parent=12 // loop_footer
          %s15 = sadd.s32 1, %s11
        $region19: #{reverse.9} parent=12 // loop_footer_branch
          %10 = sbr.rel target = $region15
        $region20: #{reverse.9} parent=12 // loop_exit
          _
      $region13: #{reverse.9} parent=4 // pred_fallthru
        _
    $region5: #{reverse.9} parent=1 // pred_fallthru
      _
    %50 = vnop
    %s51 = scalar_lea.vmem [#allocation0], 7
    %v52 = vld [vmem:[%s51] ss:$-1 sm:$0xff]
    %v53 = vrot.slane %v52, 1
    %54 = vst [vmem:[#allocation1] sm:$0xff] %v53
    %s55 = scalar_lea.vmem [#allocation0], 8
    %s56 = scalar_lea.vmem %s55, 7 [#allocation0]
    %v57 = vld [vmem:[%s56] ss:$-1 sm:$0xff]
    %v58 = vrot.slane %v57, 1
    %v59 = vlaneseq
    %v60 = vshrl.u32 %v59, 7
    %vm61 = vcmp.lt.s32.totalorder %v60, 7
    %62 = vst.msk [vmem:[#allocation1] sm:$0xff] %vm61, %v58
    %s63 = scalar_lea.vmem [#allocation1], 8
    %s64 = scalar_lea.vmem [#allocation0], 16
    %s65 = scalar_lea.vmem %s64, 7 [#allocation0]
    %v66 = vld [vmem:[%s65] ss:$-1 sm:$0xff]
    %v67 = vrot.slane %v66, 1
    %68 = vst [vmem:[%s63] sm:$0xff] %v67
    %s69 = scalar_lea.vmem %s64, 8 [#allocation0]
    %s70 = scalar_lea.vmem %s69, 7 [#allocation0]
    %v71 = vld [vmem:[%s70] ss:$-1 sm:$0xff]
    %v72 = vrot.slane %v71, 1
    %v73 = vlaneseq
    %v74 = vshrl.u32 %v73, 7
    %vm75 = vcmp.lt.s32.totalorder %v74, 7
    %76 = vst.msk [vmem:[%s63] sm:$0xff] %vm75, %v72
    %s77 = scalar_lea.vmem [#allocation1], 16
    %s78 = scalar_lea.vmem [#allocation0], 32
    %s79 = scalar_lea.vmem %s78, 7 [#allocation0]
    %v80 = vld [vmem:[%s79] ss:$-1 sm:$0xff]
    %v81 = vrot.slane %v80, 1
    %82 = vst [vmem:[%s77] sm:$0xff] %v81
    %s83 = scalar_lea.vmem %s78, 8 [#allocation0]
    %s84 = scalar_lea.vmem %s83, 7 [#allocation0]
    %v85 = vld [vmem:[%s84] ss:$-1 sm:$0xff]
    %v86 = vrot.slane %v85, 1
    %v87 = vlaneseq
    %v88 = vshrl.u32 %v87, 7
    %vm89 = vcmp.lt.s32.totalorder %v88, 7
    %90 = vst.msk [vmem:[%s77] sm:$0xff] %vm89, %v86
    %s91 = scalar_lea.vmem [#allocation1], 24
    %s92 = scalar_lea.vmem [#allocation0], 48
    %s93 = scalar_lea.vmem %s92, 7 [#allocation0]
    %v94 = vld [vmem:[%s93] ss:$-1 sm:$0xff]
    %v95 = vrot.slane %v94, 1
    %96 = vst [vmem:[%s91] sm:$0xff] %v95
    %s97 = scalar_lea.vmem %s92, 8 [#allocation0]
    %s98 = scalar_lea.vmem %s97, 7 [#allocation0]
    %v99 = vld [vmem:[%s98] ss:$-1 sm:$0xff]
    %v100 = vrot.slane %v99, 1
    %v101 = vlaneseq
    %v102 = vshrl.u32 %v101, 7
    %vm103 = vcmp.lt.s32.totalorder %v102, 7
    %104 = vst.msk [vmem:[%s91] sm:$0xff] %vm103, %v100
    %s105 = scalar_lea.vmem [#allocation1], 32
    %s106 = scalar_lea.vmem [#allocation0], 64
    %s107 = scalar_lea.vmem %s106, 7 [#allocation0]
    %v108 = vld [vmem:[%s107] ss:$-1 sm:$0xff]
    %v109 = vrot.slane %v108, 1
    %110 = vst [vmem:[%s105] sm:$0xff] %v109
    %s111 = scalar_lea.vmem %s106, 8 [#allocation0]
    %s112 = scalar_lea.vmem %s111, 7 [#allocation0]
    %v113 = vld [vmem:[%s112] ss:$-1 sm:$0xff]
    %v114 = vrot.slane %v113, 1
    %v115 = vlaneseq
    %v116 = vshrl.u32 %v115, 7
    %vm117 = vcmp.lt.s32.totalorder %v116, 7
    %118 = vst.msk [vmem:[%s105] sm:$0xff] %vm117, %v114
    // Predicated region
    $region36: #{reverse.9} parent=1 // pred_check
      _
    $region37: #{reverse.9} parent=1 // pred_check_branch
      %120 = sbr.rel (0) target = $region39
    $region38: #{reverse.9} parent=1 // pred_region
      // Predicated region
      $region40: #{reverse.9} parent=38 // pred_check
        _
      $region41: #{reverse.9} parent=38 // pred_check_branch
        %122 = sbr.rel (0) target = $region43
      $region42: #{reverse.9} parent=38 // pred_region
        // Predicated region
        $region55: #{reverse.9} parent=42 // pred_check
          _
        $region56: #{reverse.9} parent=42 // pred_check_branch
          %145 = sbr.rel (0) target = $region58
        $region57: #{reverse.9} parent=42 // pred_region
          loop: start=0, step=1, limit=1
          $region59: #{reverse.9} parent=57 // loop_pre_header
            _
          $region60: #{reverse.9} parent=57 // loop_header
            %s147 = sphi 0, %s151
            %p148 = scmp.ge.s32.totalorder %s147, 1
            %s152 = sphi [#allocation1], [#allocation1]
            %s153 = sphi %s1, %s1
          $region61: #{reverse.9} parent=57 // loop_header_branch
            %150 = sbr.rel (%p148) target = $region65
          $region62: #{reverse.9} parent=57 // loop_body
            %v154 = vld [vmem:[%s152] sm:$0xff]
            %155 = vst [vmem:[%s153] sm:$0xff] %v154
            %v156 = vld [vmem:[%s152 + $0x8] sm:$0xff]
            %157 = vst [vmem:[%s153 + $0x8] sm:$0xff] %v156
            %v158 = vld [vmem:[%s152 + $0x10] sm:$0xff]
            %159 = vst [vmem:[%s153 + $0x10] sm:$0xff] %v158
            %v160 = vld [vmem:[%s152 + $0x18] sm:$0xff]
            %161 = vst [vmem:[%s153 + $0x18] sm:$0xff] %v160
            %v162 = vld [vmem:[%s152 + $0x20] sm:$0xff]
            %163 = vst [vmem:[%s153 + $0x20] sm:$0xff] %v162
          $region63: #{reverse.9} parent=57 // loop_footer
            %s151 = sadd.s32 1, %s147
          $region64: #{reverse.9} parent=57 // loop_footer_branch
            %146 = sbr.rel target = $region60
          $region65: #{reverse.9} parent=57 // loop_exit
            _
        $region58: #{reverse.9} parent=42 // pred_fallthru
          _
        // Predicated region
        $region66: #{reverse.9} parent=42 // pred_check
          _
        $region67: #{reverse.9} parent=42 // pred_check_branch
          %165 = sbr.rel target = $region69
        $region68: #{reverse.9} parent=42 // pred_region
          _
        $region69: #{reverse.9} parent=42 // pred_fallthru
          _
      $region43: #{reverse.9} parent=38 // pred_fallthru
        _
      // Predicated region
      $region44: #{reverse.9} parent=38 // pred_check
        _
      $region45: #{reverse.9} parent=38 // pred_check_branch
        %124 = sbr.rel target = $region47
      $region46: #{reverse.9} parent=38 // pred_region
        loop: start=0, step=1, limit=1
        $region48: #{reverse.9} parent=46 // loop_pre_header
          _
        $region49: #{reverse.9} parent=46 // loop_header
          %s127 = sphi 0, %s131
          %p128 = scmp.ge.s32.totalorder %s127, 1
          %s132 = sphi [#allocation1], [#allocation1]
          %s133 = sphi %s1, %s1
        $region50: #{reverse.9} parent=46 // loop_header_branch
          %130 = sbr.rel (%p128) target = $region54
        $region51: #{reverse.9} parent=46 // loop_body
          %v134 = vld [vmem:[%s132] sm:$0xff]
          %135 = vst [vmem:[%s133] sm:$0xff] %v134
          %v136 = vld [vmem:[%s132 + $0x8] sm:$0xff]
          %137 = vst [vmem:[%s133 + $0x8] sm:$0xff] %v136
          %v138 = vld [vmem:[%s132 + $0x10] sm:$0xff]
          %139 = vst [vmem:[%s133 + $0x10] sm:$0xff] %v138
          %v140 = vld [vmem:[%s132 + $0x18] sm:$0xff]
          %141 = vst [vmem:[%s133 + $0x18] sm:$0xff] %v140
          %v142 = vld [vmem:[%s132 + $0x20] sm:$0xff]
          %143 = vst [vmem:[%s133 + $0x20] sm:$0xff] %v142
        $region52: #{reverse.9} parent=46 // loop_footer
          %s131 = sadd.s32 1, %s127
        $region53: #{reverse.9} parent=46 // loop_footer_branch
          %126 = sbr.rel target = $region49
        $region54: #{reverse.9} parent=46 // loop_exit
          _
      $region47: #{reverse.9} parent=38 // pred_fallthru
        _
    $region39: #{reverse.9} parent=1 // pred_fallthru
      _
    %166 = vnop

// kernel: _lambda_.10
$region0: #{_lambda_.10}
  #allocation0 [shape = 'u32[]', space=smem, size = 0x4, offset = 0x4, fixed_abs, tag = 'smem constant byte address 0x4 - core index']
  #allocation1 [shape = 'u32[144,128]{1,0:T(1,128)}', space=vmem, size = 0x12000, scoped, tag = 'internal scratch']
  %s0 = inlined_call_operand.vmem [shape: f32[5,256], index: 0, kind: input, shape index: {}]
  %s1 = inlined_call_operand.vmem [shape: f32[5,5], index: 1, kind: input, shape index: {}]
  %s2 = inlined_call_operand.vmem [shape: f32[5,1], index: 2, kind: input, shape index: {}]
  %s3 = inlined_call_operand.vmem [shape: f32[5,256], index: 3, kind: input, shape index: {}]
  %s4 = inlined_call_operand.vmem [shape: f32[5,256], index: 4, kind: output, shape index: {}]
  %s5 = sld [smem:[#allocation0]]
  $region26: #{_lambda_.10} parent=0
    _
  %s7 = ssub.s32 1, %s5
  %s8 = scalar_select 0, %s7, %s5
  // Predicated region
  $region2: #{_lambda_.10} parent=0 // pred_check
    _
  $region3: #{_lambda_.10} parent=0 // pred_check_branch
    %10 = sbr.rel (0) target = $region5
  $region4: #{_lambda_.10} parent=0 // pred_region
    _
  $region5: #{_lambda_.10} parent=0 // pred_fallthru
    _
  // Predicated region
  $region6: #{_lambda_.10} parent=0 // pred_check
    _
  $region7: #{_lambda_.10} parent=0 // pred_check_branch
    %12 = sbr.rel (0) target = $region9
  $region8: #{_lambda_.10} parent=0 // pred_region
    _
  $region9: #{_lambda_.10} parent=0 // pred_fallthru
    _
  // Predicated region
  $region10: #{_lambda_.10} parent=0 // pred_check
    _
  $region11: #{_lambda_.10} parent=0 // pred_check_branch
    %14 = sbr.rel (0) target = $region13
  $region12: #{_lambda_.10} parent=0 // pred_region
    _
  $region13: #{_lambda_.10} parent=0 // pred_fallthru
    _
  // Predicated region
  $region14: #{_lambda_.10} parent=0 // pred_check
    _
  $region15: #{_lambda_.10} parent=0 // pred_check_branch
    %16 = sbr.rel (0) target = $region17
  $region16: #{_lambda_.10} parent=0 // pred_region
    _
  $region17: #{_lambda_.10} parent=0 // pred_fallthru
    _
  %v18 = vld [vmem:[%s1] sm:$0x1f]
  %v19 = vpack.c.bf16 %v18, %v18
  %v20 = vld [vmem:[%s0] sm:$0x1f]
  %v21 = vld [vmem:[%s0 + $0x8] sm:$0x1f]
  %v22 = vpack.c.bf16 %v20, %v20
  %v23 = vpack.c.bf16 %v21, %v21
  %v24 = vld [vmem:[%s2] sm:$0x1f]
  %26 = vset.pattern.permute.xlu0 0
  %27 = vperm.xlu0 %26, %v24
  %v28 = vpop.permute.xlu0 %27
  %vm30 = vcmask 39936
  %v32 = vsel %vm30, %v19, 0
  %vm34 = vcmask 1041408
  %vm35 = vcmask 1042432
  %v36 = vsel %vm34, 4294967295, 65535
  %v37 = vsel %vm35, %v36, 0
  %v39 = vand.u32 %v22, %v37
  %v42 = vand.u32 %v23, %v37
  %44 = vmatprep.subr.bf16.mxu0 %v42
  %45 = vmatpush1.bf16.msra.mxu0 %v39
  %46 = vmatprep.subr.bf16.mxu0 0
  %47 = vmatpush1.bf16.msra.mxu0 0
  %48 = vmatprep.subr.bf16.mxu0 0
  %49 = vmatpush1.bf16.msra.mxu0 0
  %50 = vmatprep.subr.bf16.mxu0 0
  %51 = vmatpush1.bf16.msra.mxu0 0
  %52 = vmatprep.subr.bf16.mxu0 0
  %53 = vmatpush1.bf16.msra.mxu0 0
  %54 = vmatprep.subr.bf16.mxu0 0
  %55 = vmatpush1.bf16.msra.mxu0 0
  %56 = vmatprep.subr.bf16.mxu0 0
  %57 = vmatpush1.bf16.msra.mxu0 0
  %58 = vmatprep.subr.bf16.mxu0 0
  %59 = vmatpush1.bf16.msra.mxu0 0
  %60 = vmatprep.subr.bf16.mxu0 0
  %61 = vmatpush1.bf16.msra.mxu0 0
  %62 = vmatprep.subr.bf16.mxu0 0
  %63 = vmatpush1.bf16.msra.mxu0 0
  %64 = vmatprep.subr.bf16.mxu0 0
  %65 = vmatpush1.bf16.msra.mxu0 0
  %66 = vmatprep.subr.bf16.mxu0 0
  %67 = vmatpush1.bf16.msra.mxu0 0
  %68 = vmatprep.subr.bf16.mxu0 0
  %69 = vmatpush1.bf16.msra.mxu0 0
  %70 = vmatprep.subr.bf16.mxu0 0
  %71 = vmatpush1.bf16.msra.mxu0 0
  %72 = vmatprep.subr.bf16.mxu0 0
  %73 = vmatpush1.bf16.msra.mxu0 0
  %74 = vmatprep.subr.bf16.mxu0 0
  %75 = vmatpush1.bf16.msra.mxu0 0
  %76 = vmatprep.mubr.bf16.mxu0 0
  %77 = vmatmul.mubr.bf16.gmra.mrb[0].mxu0 %v32
  %v78 = vpop.f32.mrb[0].mxu0
  %v79 = vadd.f32 %v28, %v78
  %v80 = vpop.f32.mrb[0].mxu0
  %v81 = vadd.f32 %v28, %v80
  %v82 = vpop.f32.mrb[0].mxu0
  %v83 = vpop.f32.mrb[0].mxu0
  %84 = vdwg.mxu0
  %v85 = vld [vmem:[%s3] sm:$0x1f]
  %v86 = vld [vmem:[%s3 + $0x8] sm:$0x1f]
  %v87 = vadd.f32 %v79, %v85
  %v88 = vadd.f32 %v81, %v86
  %89 = vst [vmem:[%s4] sm:$0x1f] %v87
  %90 = vst [vmem:[%s4 + $0x8] sm:$0x1f] %v88
  // Predicated region
  $region18: #{_lambda_.10} parent=0 // pred_check
    _
  $region19: #{_lambda_.10} parent=0 // pred_check_branch
    %92 = sbr.rel (0) target = $region21
  $region20: #{_lambda_.10} parent=0 // pred_region
    _
  $region21: #{_lambda_.10} parent=0 // pred_fallthru
    _
  // Predicated region
  $region22: #{_lambda_.10} parent=0 // pred_check
    _
  $region23: #{_lambda_.10} parent=0 // pred_check_branch
    %94 = sbr.rel (0) target = $region25
  $region24: #{_lambda_.10} parent=0 // pred_region
    _
  $region25: #{_lambda_.10} parent=0 // pred_fallthru
    _

// kernel: _lambda_.9
$region0: #{_lambda_.9}
  #allocation0 [shape = 'u32[]', space=smem, size = 0x4, offset = 0x4, fixed_abs, tag = 'smem constant byte address 0x4 - core index']
  #allocation1 [shape = 'u32[144,128]{1,0:T(1,128)}', space=vmem, size = 0x12000, scoped, tag = 'internal scratch']
  %s0 = inlined_call_operand.vmem [shape: f32[5,256], index: 0, kind: input, shape index: {}]
  %s1 = inlined_call_operand.vmem [shape: f32[5,5], index: 1, kind: input, shape index: {}]
  %s2 = inlined_call_operand.vmem [shape: f32[5,1], index: 2, kind: input, shape index: {}]
  %s3 = inlined_call_operand.vmem [shape: f32[5,256], index: 3, kind: input, shape index: {}]
  %s4 = inlined_call_operand.vmem [shape: f32[5,256], index: 4, kind: output, shape index: {}]
  %s5 = sld [smem:[#allocation0]]
  $region26: #{_lambda_.9} parent=0
    _
  %s7 = ssub.s32 1, %s5
  %s8 = scalar_select 0, %s7, %s5
  // Predicated region
  $region2: #{_lambda_.9} parent=0 // pred_check
    _
  $region3: #{_lambda_.9} parent=0 // pred_check_branch
    %10 = sbr.rel (0) target = $region5
  $region4: #{_lambda_.9} parent=0 // pred_region
    _
  $region5: #{_lambda_.9} parent=0 // pred_fallthru
    _
  // Predicated region
  $region6: #{_lambda_.9} parent=0 // pred_check
    _
  $region7: #{_lambda_.9} parent=0 // pred_check_branch
    %12 = sbr.rel (0) target = $region9
  $region8: #{_lambda_.9} parent=0 // pred_region
    _
  $region9: #{_lambda_.9} parent=0 // pred_fallthru
    _
  // Predicated region
  $region10: #{_lambda_.9} parent=0 // pred_check
    _
  $region11: #{_lambda_.9} parent=0 // pred_check_branch
    %14 = sbr.rel (0) target = $region13
  $region12: #{_lambda_.9} parent=0 // pred_region
    _
  $region13: #{_lambda_.9} parent=0 // pred_fallthru
    _
  // Predicated region
  $region14: #{_lambda_.9} parent=0 // pred_check
    _
  $region15: #{_lambda_.9} parent=0 // pred_check_branch
    %16 = sbr.rel (0) target = $region17
  $region16: #{_lambda_.9} parent=0 // pred_region
    _
  $region17: #{_lambda_.9} parent=0 // pred_fallthru
    _
  %v18 = vld [vmem:[%s1] sm:$0x1f]
  %v19 = vpack.c.bf16 %v18, %v18
  %v20 = vld [vmem:[%s0] sm:$0x1f]
  %v21 = vld [vmem:[%s0 + $0x8] sm:$0x1f]
  %v22 = vpack.c.bf16 %v20, %v20
  %v23 = vpack.c.bf16 %v21, %v21
  %v24 = vld [vmem:[%s2] sm:$0x1f]
  %26 = vset.pattern.permute.xlu0 0
  %27 = vperm.xlu0 %26, %v24
  %v28 = vpop.permute.xlu0 %27
  %vm30 = vcmask 39936
  %v32 = vsel %vm30, %v19, 0
  %vm34 = vcmask 1041408
  %vm35 = vcmask 1042432
  %v36 = vsel %vm34, 4294967295, 65535
  %v37 = vsel %vm35, %v36, 0
  %v39 = vand.u32 %v22, %v37
  %v42 = vand.u32 %v23, %v37
  %44 = vmatprep.subr.bf16.mxu0 %v42
  %45 = vmatpush1.bf16.msra.mxu0 %v39
  %46 = vmatprep.subr.bf16.mxu0 0
  %47 = vmatpush1.bf16.msra.mxu0 0
  %48 = vmatprep.subr.bf16.mxu0 0
  %49 = vmatpush1.bf16.msra.mxu0 0
  %50 = vmatprep.subr.bf16.mxu0 0
  %51 = vmatpush1.bf16.msra.mxu0 0
  %52 = vmatprep.subr.bf16.mxu0 0
  %53 = vmatpush1.bf16.msra.mxu0 0
  %54 = vmatprep.subr.bf16.mxu0 0
  %55 = vmatpush1.bf16.msra.mxu0 0
  %56 = vmatprep.subr.bf16.mxu0 0
  %57 = vmatpush1.bf16.msra.mxu0 0
  %58 = vmatprep.subr.bf16.mxu0 0
  %59 = vmatpush1.bf16.msra.mxu0 0
  %60 = vmatprep.subr.bf16.mxu0 0
  %61 = vmatpush1.bf16.msra.mxu0 0
  %62 = vmatprep.subr.bf16.mxu0 0
  %63 = vmatpush1.bf16.msra.mxu0 0
  %64 = vmatprep.subr.bf16.mxu0 0
  %65 = vmatpush1.bf16.msra.mxu0 0
  %66 = vmatprep.subr.bf16.mxu0 0
  %67 = vmatpush1.bf16.msra.mxu0 0
  %68 = vmatprep.subr.bf16.mxu0 0
  %69 = vmatpush1.bf16.msra.mxu0 0
  %70 = vmatprep.subr.bf16.mxu0 0
  %71 = vmatpush1.bf16.msra.mxu0 0
  %72 = vmatprep.subr.bf16.mxu0 0
  %73 = vmatpush1.bf16.msra.mxu0 0
  %74 = vmatprep.subr.bf16.mxu0 0
  %75 = vmatpush1.bf16.msra.mxu0 0
  %76 = vmatprep.mubr.bf16.mxu0 0
  %77 = vmatmul.mubr.bf16.gmra.mrb[0].mxu0 %v32
  %v78 = vpop.f32.mrb[0].mxu0
  %v79 = vadd.f32 %v28, %v78
  %v80 = vpop.f32.mrb[0].mxu0
  %v81 = vadd.f32 %v28, %v80
  %v82 = vpop.f32.mrb[0].mxu0
  %v83 = vpop.f32.mrb[0].mxu0
  %84 = vdwg.mxu0
  %v85 = vld [vmem:[%s3] sm:$0x1f]
  %v86 = vld [vmem:[%s3 + $0x8] sm:$0x1f]
  %v87 = vadd.f32 %v79, %v85
  %v88 = vadd.f32 %v81, %v86
  %v89 = vmul.f32 %v87, %v87
  %v90 = vmul.f32 %v88, %v88
  %v91 = vmul.f32 %v87, %v89
  %v92 = vmul.f32 %v88, %v90
  %v93 = vmul.f32 %v91, 0.044715
  %v94 = vmul.f32 %v92, 0.044715
  %v95 = vadd.f32 %v87, %v93
  %v96 = vadd.f32 %v88, %v94
  %v97 = vmul.f32 %v95, 0.7978846
  %v98 = vmul.f32 %v96, 0.7978846
  %v99 = vtanh.pop %v97
  %v100 = vtanh.pop %v98
  %v101 = vadd.f32 %v99, 1.0
  %v102 = vadd.f32 %v100, 1.0
  %v103 = vmul.f32 %v101, 0.5
  %v104 = vmul.f32 %v102, 0.5
  %v105 = vmul.f32 %v87, %v103
  %v106 = vmul.f32 %v88, %v104
  %107 = vst [vmem:[%s4] sm:$0x1f] %v105
  %108 = vst [vmem:[%s4 + $0x8] sm:$0x1f] %v106
  // Predicated region
  $region18: #{_lambda_.9} parent=0 // pred_check
    _
  $region19: #{_lambda_.9} parent=0 // pred_check_branch
    %110 = sbr.rel (0) target = $region21
  $region20: #{_lambda_.9} parent=0 // pred_region
    _
  $region21: #{_lambda_.9} parent=0 // pred_fallthru
    _
  // Predicated region
  $region22: #{_lambda_.9} parent=0 // pred_check
    _
  $region23: #{_lambda_.9} parent=0 // pred_check_branch
    %112 = sbr.rel (0) target = $region25
  $region24: #{_lambda_.9} parent=0 // pred_region
    _
  $region25: #{_lambda_.9} parent=0 // pred_fallthru
    _

// kernel: _lambda_.11
$region0: #{_lambda_.11}
  #allocation0 [shape = 'u32[]', space=smem, size = 0x4, offset = 0x4, fixed_abs, tag = 'smem constant byte address 0x4 - core index']
  #allocation1 [shape = 'u32[144,128]{1,0:T(1,128)}', space=vmem, size = 0x12000, scoped, tag = 'internal scratch']
  #allocation2 [shape = 'f32[1,1]{1,0:T(1,128)S(1)}', space=vmem, size = 0x200, scoped, tag = 'scoped memory for _lambda_.11']
  %s0 = inlined_call_operand.vmem [shape: f32[5,256], index: 0, kind: input, shape index: {}]
  %s1 = inlined_call_operand.vmem [shape: f32[128,5], index: 1, kind: input, shape index: {}]
  %s2 = inlined_call_operand.vmem [shape: f32[128,1], index: 2, kind: input, shape index: {}]
  %s3 = inlined_call_operand.vmem [shape: f32[1,128], index: 3, kind: input, shape index: {}]
  %s4 = inlined_call_operand.<no memory space> [shape: f32[1,1], index: 4, kind: input, shape index: {}]
  %s5 = inlined_call_operand.hbm [shape: f32[1,256], index: 5, kind: output, shape index: {}]
  %s6 = sld [smem:[#allocation0]]
  $region30: #{_lambda_.11} parent=0
    _
  %s8 = ssub.s32 1, %s6
  %s9 = scalar_select 0, %s8, %s6
  %v10 = vstv %s4
  %11 = vst [vmem:[#allocation2] sm:$0x1] %v10
  $region1: #{_lambda_.11} parent=0
    #allocation3 [shape = 'u8[1024]{0}', space=vmem, size = 0x400, scoped, tag = 'output window, operand 0, single buffered']
    #allocation4 [shape = 's32[1]{0}', space=sflag, size = 0x4, scoped, tag = 'scoped memory for _lambda_.11']
    %12 = vsyncpa [#allocation4], 0
    // Predicated region
    $region2: #{_lambda_.11} parent=1 // pred_check
      _
    $region3: #{_lambda_.11} parent=1 // pred_check_branch
      %14 = sbr.rel (0) target = $region5
    $region4: #{_lambda_.11} parent=1 // pred_region
      _
    $region5: #{_lambda_.11} parent=1 // pred_fallthru
      _
    // Predicated region
    $region6: #{_lambda_.11} parent=1 // pred_check
      _
    $region7: #{_lambda_.11} parent=1 // pred_check_branch
      %16 = sbr.rel (0) target = $region9
    $region8: #{_lambda_.11} parent=1 // pred_region
      _
    $region9: #{_lambda_.11} parent=1 // pred_fallthru
      _
    // Predicated region
    $region10: #{_lambda_.11} parent=1 // pred_check
      _
    $region11: #{_lambda_.11} parent=1 // pred_check_branch
      %18 = sbr.rel (0) target = $region13
    $region12: #{_lambda_.11} parent=1 // pred_region
      _
    $region13: #{_lambda_.11} parent=1 // pred_fallthru
      _
    // Predicated region
    $region14: #{_lambda_.11} parent=1 // pred_check
      _
    $region15: #{_lambda_.11} parent=1 // pred_check_branch
      %20 = sbr.rel (0) target = $region17
    $region16: #{_lambda_.11} parent=1 // pred_region
      _
    $region17: #{_lambda_.11} parent=1 // pred_fallthru
      _
    // Predicated region
    $region18: #{_lambda_.11} parent=1 // pred_check
      _
    $region19: #{_lambda_.11} parent=1 // pred_check_branch
      %22 = sbr.rel (0) target = $region21
    $region20: #{_lambda_.11} parent=1 // pred_region
      _
    $region21: #{_lambda_.11} parent=1 // pred_fallthru
      _
    %v24 = vld [vmem:[%s0] sm:$0x1f]
    %v25 = vld [vmem:[%s0 + $0x8] sm:$0x1f]
    %v26 = vld [vmem:[%s1] sm:$0xff]
    %v27 = vld [vmem:[%s1 + $0x8] sm:$0xff]
    %v28 = vld [vmem:[%s1 + $0x10] sm:$0xff]
    %v29 = vld [vmem:[%s1 + $0x18] sm:$0xff]
    %v30 = vld [vmem:[%s1 + $0x20] sm:$0xff]
    %v31 = vld [vmem:[%s1 + $0x28] sm:$0xff]
    %v32 = vld [vmem:[%s1 + $0x30] sm:$0xff]
    %v33 = vld [vmem:[%s1 + $0x38] sm:$0xff]
    %v34 = vld [vmem:[%s1 + $0x40] sm:$0xff]
    %v35 = vld [vmem:[%s1 + $0x48] sm:$0xff]
    %v36 = vld [vmem:[%s1 + $0x50] sm:$0xff]
    %v37 = vld [vmem:[%s1 + $0x58] sm:$0xff]
    %v38 = vld [vmem:[%s1 + $0x60] sm:$0xff]
    %v39 = vld [vmem:[%s1 + $0x68] sm:$0xff]
    %v40 = vld [vmem:[%s1 + $0x70] sm:$0xff]
    %v41 = vld [vmem:[%s1 + $0x78] sm:$0xff]
    %v42 = vpack.c.bf16 %v27, %v26
    %v43 = vpack.c.bf16 %v29, %v28
    %v44 = vpack.c.bf16 %v31, %v30
    %v45 = vpack.c.bf16 %v33, %v32
    %v46 = vpack.c.bf16 %v35, %v34
    %v47 = vpack.c.bf16 %v37, %v36
    %v48 = vpack.c.bf16 %v39, %v38
    %v49 = vpack.c.bf16 %v41, %v40
    %v50 = vpack.c.bf16 %v24, %v24
    %v51 = vpack.c.bf16 %v25, %v25
    %v52 = vld [vmem:[%s2] sm:$0xff]
    %v53 = vld [vmem:[%s2 + $0x8] sm:$0xff]
    %v54 = vld [vmem:[%s2 + $0x10] sm:$0xff]
    %v55 = vld [vmem:[%s2 + $0x18] sm:$0xff]
    %v56 = vld [vmem:[%s2 + $0x20] sm:$0xff]
    %v57 = vld [vmem:[%s2 + $0x28] sm:$0xff]
    %v58 = vld [vmem:[%s2 + $0x30] sm:$0xff]
    %v59 = vld [vmem:[%s2 + $0x38] sm:$0xff]
    %v60 = vld [vmem:[%s2 + $0x40] sm:$0xff]
    %v61 = vld [vmem:[%s2 + $0x48] sm:$0xff]
    %v62 = vld [vmem:[%s2 + $0x50] sm:$0xff]
    %v63 = vld [vmem:[%s2 + $0x58] sm:$0xff]
    %v64 = vld [vmem:[%s2 + $0x60] sm:$0xff]
    %v65 = vld [vmem:[%s2 + $0x68] sm:$0xff]
    %v66 = vld [vmem:[%s2 + $0x70] sm:$0xff]
    %v67 = vld [vmem:[%s2 + $0x78] sm:$0xff]
    %69 = vset.pattern.permute.xlu0 0
    %70 = vperm.xlu0 %69, %v52
    %v71 = vpop.permute.xlu0 %70
    %74 = vset.pattern.permute.xlu0 0
    %75 = vperm.xlu0 %74, %v53
    %v76 = vpop.permute.xlu0 %75
    %79 = vset.pattern.permute.xlu0 0
    %80 = vperm.xlu0 %79, %v54
    %v81 = vpop.permute.xlu0 %80
    %84 = vset.pattern.permute.xlu0 0
    %85 = vperm.xlu0 %84, %v55
    %v86 = vpop.permute.xlu0 %85
    %89 = vset.pattern.permute.xlu0 0
    %90 = vperm.xlu0 %89, %v56
    %v91 = vpop.permute.xlu0 %90
    %94 = vset.pattern.permute.xlu0 0
    %95 = vperm.xlu0 %94, %v57
    %v96 = vpop.permute.xlu0 %95
    %99 = vset.pattern.permute.xlu0 0
    %100 = vperm.xlu0 %99, %v58
    %v101 = vpop.permute.xlu0 %100
    %104 = vset.pattern.permute.xlu0 0
    %105 = vperm.xlu0 %104, %v59
    %v106 = vpop.permute.xlu0 %105
    %109 = vset.pattern.permute.xlu0 0
    %110 = vperm.xlu0 %109, %v60
    %v111 = vpop.permute.xlu0 %110
    %114 = vset.pattern.permute.xlu0 0
    %115 = vperm.xlu0 %114, %v61
    %v116 = vpop.permute.xlu0 %115
    %119 = vset.pattern.permute.xlu0 0
    %120 = vperm.xlu0 %119, %v62
    %v121 = vpop.permute.xlu0 %120
    %124 = vset.pattern.permute.xlu0 0
    %125 = vperm.xlu0 %124, %v63
    %v126 = vpop.permute.xlu0 %125
    %129 = vset.pattern.permute.xlu0 0
    %130 = vperm.xlu0 %129, %v64
    %v131 = vpop.permute.xlu0 %130
    %134 = vset.pattern.permute.xlu0 0
    %135 = vperm.xlu0 %134, %v65
    %v136 = vpop.permute.xlu0 %135
    %139 = vset.pattern.permute.xlu0 0
    %140 = vperm.xlu0 %139, %v66
    %v141 = vpop.permute.xlu0 %140
    %144 = vset.pattern.permute.xlu0 0
    %145 = vperm.xlu0 %144, %v67
    %v146 = vpop.permute.xlu0 %145
    %vm148 = vcmask 39936
    %v150 = vsel %vm148, %v42, 0
    %v153 = vsel %vm148, %v43, 0
    %v156 = vsel %vm148, %v44, 0
    %v159 = vsel %vm148, %v45, 0
    %v162 = vsel %vm148, %v46, 0
    %v165 = vsel %vm148, %v47, 0
    %v168 = vsel %vm148, %v48, 0
    %v171 = vsel %vm148, %v49, 0
    %vm173 = vcmask 1041408
    %vm174 = vcmask 1042432
    %v175 = vsel %vm173, 4294967295, 65535
    %v176 = vsel %vm174, %v175, 0
    %v178 = vand.u32 %v50, %v176
    %v181 = vand.u32 %v51, %v176
    %183 = vmatprep.subr.bf16.mxu0 %v181
    %184 = vmatpush1.bf16.msra.mxu0 %v178
    %185 = vmatprep.subr.bf16.mxu0 0
    %186 = vmatpush1.bf16.msra.mxu0 0
    %187 = vmatprep.subr.bf16.mxu0 0
    %188 = vmatpush1.bf16.msra.mxu0 0
    %189 = vmatprep.subr.bf16.mxu0 0
    %190 = vmatpush1.bf16.msra.mxu0 0
    %191 = vmatprep.subr.bf16.mxu0 0
    %192 = vmatpush1.bf16.msra.mxu0 0
    %193 = vmatprep.subr.bf16.mxu0 0
    %194 = vmatpush1.bf16.msra.mxu0 0
    %195 = vmatprep.subr.bf16.mxu0 0
    %196 = vmatpush1.bf16.msra.mxu0 0
    %197 = vmatprep.subr.bf16.mxu0 0
    %198 = vmatpush1.bf16.msra.mxu0 0
    %199 = vmatprep.subr.bf16.mxu0 0
    %200 = vmatpush1.bf16.msra.mxu0 0
    %201 = vmatprep.subr.bf16.mxu0 0
    %202 = vmatpush1.bf16.msra.mxu0 0
    %203 = vmatprep.subr.bf16.mxu0 0
    %204 = vmatpush1.bf16.msra.mxu0 0
    %205 = vmatprep.subr.bf16.mxu0 0
    %206 = vmatpush1.bf16.msra.mxu0 0
    %207 = vmatprep.subr.bf16.mxu0 0
    %208 = vmatpush1.bf16.msra.mxu0 0
    %209 = vmatprep.subr.bf16.mxu0 0
    %210 = vmatpush1.bf16.msra.mxu0 0
    %211 = vmatprep.subr.bf16.mxu0 0
    %212 = vmatpush1.bf16.msra.mxu0 0
    %213 = vmatprep.subr.bf16.mxu0 0
    %214 = vmatpush1.bf16.msra.mxu0 0
    %215 = vmatprep.mubr.bf16.mxu0 0
    %216 = vmatmul.mubr.bf16.gmra.mrb[0].mxu0 %v150
    %v217 = vpop.f32.mrb[0].mxu0
    %v218 = vadd.f32 %v71, %v217
    %v219 = vpop.f32.mrb[0].mxu0
    %v220 = vadd.f32 %v71, %v219
    %v221 = vpop.f32.mrb[0].mxu0
    %v222 = vadd.f32 %v76, %v221
    %v223 = vpop.f32.mrb[0].mxu0
    %v224 = vadd.f32 %v76, %v223
    %225 = vmatprep.mubr.bf16.mxu0 0
    %226 = vmatmul.mubr.bf16.gmra.mrb[0].mxu0 %v153
    %v227 = vpop.f32.mrb[0].mxu0
    %v228 = vadd.f32 %v81, %v227
    %v229 = vpop.f32.mrb[0].mxu0
    %v230 = vadd.f32 %v81, %v229
    %v231 = vpop.f32.mrb[0].mxu0
    %v232 = vadd.f32 %v86, %v231
    %v233 = vpop.f32.mrb[0].mxu0
    %v234 = vadd.f32 %v86, %v233
    %235 = vmatprep.mubr.bf16.mxu0 0
    %236 = vmatmul.mubr.bf16.gmra.mrb[0].mxu0 %v156
    %v237 = vpop.f32.mrb[0].mxu0
    %v238 = vadd.f32 %v91, %v237
    %v239 = vpop.f32.mrb[0].mxu0
    %v240 = vadd.f32 %v91, %v239
    %v241 = vpop.f32.mrb[0].mxu0
    %v242 = vadd.f32 %v96, %v241
    %v243 = vpop.f32.mrb[0].mxu0
    %v244 = vadd.f32 %v96, %v243
    %245 = vmatprep.mubr.bf16.mxu0 0
    %246 = vmatmul.mubr.bf16.gmra.mrb[0].mxu0 %v159
    %v247 = vpop.f32.mrb[0].mxu0
    %v248 = vadd.f32 %v101, %v247
    %v249 = vpop.f32.mrb[0].mxu0
    %v250 = vadd.f32 %v101, %v249
    %v251 = vpop.f32.mrb[0].mxu0
    %v252 = vadd.f32 %v106, %v251
    %v253 = vpop.f32.mrb[0].mxu0
    %v254 = vadd.f32 %v106, %v253
    %255 = vmatprep.mubr.bf16.mxu0 0
    %256 = vmatmul.mubr.bf16.gmra.mrb[0].mxu0 %v162
    %v257 = vpop.f32.mrb[0].mxu0
    %v258 = vadd.f32 %v111, %v257
    %v259 = vpop.f32.mrb[0].mxu0
    %v260 = vadd.f32 %v111, %v259
    %v261 = vpop.f32.mrb[0].mxu0
    %v262 = vadd.f32 %v116, %v261
    %v263 = vpop.f32.mrb[0].mxu0
    %v264 = vadd.f32 %v116, %v263
    %265 = vmatprep.mubr.bf16.mxu0 0
    %266 = vmatmul.mubr.bf16.gmra.mrb[0].mxu0 %v165
    %v267 = vpop.f32.mrb[0].mxu0
    %v268 = vadd.f32 %v121, %v267
    %v269 = vpop.f32.mrb[0].mxu0
    %v270 = vadd.f32 %v121, %v269
    %v271 = vpop.f32.mrb[0].mxu0
    %v272 = vadd.f32 %v126, %v271
    %v273 = vpop.f32.mrb[0].mxu0
    %v274 = vadd.f32 %v126, %v273
    %275 = vmatprep.mubr.bf16.mxu0 0
    %276 = vmatmul.mubr.bf16.gmra.mrb[0].mxu0 %v168
    %v277 = vpop.f32.mrb[0].mxu0
    %v278 = vadd.f32 %v131, %v277
    %v279 = vpop.f32.mrb[0].mxu0
    %v280 = vadd.f32 %v131, %v279
    %v281 = vpop.f32.mrb[0].mxu0
    %v282 = vadd.f32 %v136, %v281
    %v283 = vpop.f32.mrb[0].mxu0
    %v284 = vadd.f32 %v136, %v283
    %285 = vmatprep.mubr.bf16.mxu0 0
    %286 = vmatmul.mubr.bf16.gmra.mrb[0].mxu0 %v171
    %v287 = vpop.f32.mrb[0].mxu0
    %v288 = vadd.f32 %v141, %v287
    %v289 = vpop.f32.mrb[0].mxu0
    %v290 = vadd.f32 %v141, %v289
    %v291 = vpop.f32.mrb[0].mxu0
    %v292 = vadd.f32 %v146, %v291
    %v293 = vpop.f32.mrb[0].mxu0
    %v294 = vadd.f32 %v146, %v293
    %295 = vdwg.mxu0
    %v296 = vmul.f32 %v218, %v218
    %v297 = vmul.f32 %v220, %v220
    %v298 = vmul.f32 %v222, %v222
    %v299 = vmul.f32 %v224, %v224
    %v300 = vmul.f32 %v228, %v228
    %v301 = vmul.f32 %v230, %v230
    %v302 = vmul.f32 %v232, %v232
    %v303 = vmul.f32 %v234, %v234
    %v304 = vmul.f32 %v238, %v238
    %v305 = vmul.f32 %v240, %v240
    %v306 = vmul.f32 %v242, %v242
    %v307 = vmul.f32 %v244, %v244
    %v308 = vmul.f32 %v248, %v248
    %v309 = vmul.f32 %v250, %v250
    %v310 = vmul.f32 %v252, %v252
    %v311 = vmul.f32 %v254, %v254
    %v312 = vmul.f32 %v258, %v258
    %v313 = vmul.f32 %v260, %v260
    %v314 = vmul.f32 %v262, %v262
    %v315 = vmul.f32 %v264, %v264
    %v316 = vmul.f32 %v268, %v268
    %v317 = vmul.f32 %v270, %v270
    %v318 = vmul.f32 %v272, %v272
    %v319 = vmul.f32 %v274, %v274
    %v320 = vmul.f32 %v278, %v278
    %v321 = vmul.f32 %v280, %v280
    %v322 = vmul.f32 %v282, %v282
    %v323 = vmul.f32 %v284, %v284
    %v324 = vmul.f32 %v288, %v288
    %v325 = vmul.f32 %v290, %v290
    %v326 = vmul.f32 %v292, %v292
    %v327 = vmul.f32 %v294, %v294
    %v328 = vmul.f32 %v218, %v296
    %v329 = vmul.f32 %v220, %v297
    %v330 = vmul.f32 %v222, %v298
    %v331 = vmul.f32 %v224, %v299
    %v332 = vmul.f32 %v228, %v300
    %v333 = vmul.f32 %v230, %v301
    %v334 = vmul.f32 %v232, %v302
    %v335 = vmul.f32 %v234, %v303
    %v336 = vmul.f32 %v238, %v304
    %v337 = vmul.f32 %v240, %v305
    %v338 = vmul.f32 %v242, %v306
    %v339 = vmul.f32 %v244, %v307
    %v340 = vmul.f32 %v248, %v308
    %v341 = vmul.f32 %v250, %v309
    %v342 = vmul.f32 %v252, %v310
    %v343 = vmul.f32 %v254, %v311
    %v344 = vmul.f32 %v258, %v312
    %v345 = vmul.f32 %v260, %v313
    %v346 = vmul.f32 %v262, %v314
    %v347 = vmul.f32 %v264, %v315
    %v348 = vmul.f32 %v268, %v316
    %v349 = vmul.f32 %v270, %v317
    %v350 = vmul.f32 %v272, %v318
    %v351 = vmul.f32 %v274, %v319
    %v352 = vmul.f32 %v278, %v320
    %v353 = vmul.f32 %v280, %v321
    %v354 = vmul.f32 %v282, %v322
    %v355 = vmul.f32 %v284, %v323
    %v356 = vmul.f32 %v288, %v324
    %v357 = vmul.f32 %v290, %v325
    %v358 = vmul.f32 %v292, %v326
    %v359 = vmul.f32 %v294, %v327
    %v360 = vmul.f32 %v328, 0.044715
    %v361 = vmul.f32 %v329, 0.044715
    %v362 = vmul.f32 %v330, 0.044715
    %v363 = vmul.f32 %v331, 0.044715
    %v364 = vmul.f32 %v332, 0.044715
    %v365 = vmul.f32 %v333, 0.044715
    %v366 = vmul.f32 %v334, 0.044715
    %v367 = vmul.f32 %v335, 0.044715
    %v368 = vmul.f32 %v336, 0.044715
    %v369 = vmul.f32 %v337, 0.044715
    %v370 = vmul.f32 %v338, 0.044715
    %v371 = vmul.f32 %v339, 0.044715
    %v372 = vmul.f32 %v340, 0.044715
    %v373 = vmul.f32 %v341, 0.044715
    %v374 = vmul.f32 %v342, 0.044715
    %v375 = vmul.f32 %v343, 0.044715
    %v376 = vmul.f32 %v344, 0.044715
    %v377 = vmul.f32 %v345, 0.044715
    %v378 = vmul.f32 %v346, 0.044715
    %v379 = vmul.f32 %v347, 0.044715
    %v380 = vmul.f32 %v348, 0.044715
    %v381 = vmul.f32 %v349, 0.044715
    %v382 = vmul.f32 %v350, 0.044715
    %v383 = vmul.f32 %v351, 0.044715
    %v384 = vmul.f32 %v352, 0.044715
    %v385 = vmul.f32 %v353, 0.044715
    %v386 = vmul.f32 %v354, 0.044715
    %v387 = vmul.f32 %v355, 0.044715
    %v388 = vmul.f32 %v356, 0.044715
    %v389 = vmul.f32 %v357, 0.044715
    %v390 = vmul.f32 %v358, 0.044715
    %v391 = vmul.f32 %v359, 0.044715
    %v392 = vadd.f32 %v218, %v360
    %v393 = vadd.f32 %v220, %v361
    %v394 = vadd.f32 %v222, %v362
    %v395 = vadd.f32 %v224, %v363
    %v396 = vadd.f32 %v228, %v364
    %v397 = vadd.f32 %v230, %v365
    %v398 = vadd.f32 %v232, %v366
    %v399 = vadd.f32 %v234, %v367
    %v400 = vadd.f32 %v238, %v368
    %v401 = vadd.f32 %v240, %v369
    %v402 = vadd.f32 %v242, %v370
    %v403 = vadd.f32 %v244, %v371
    %v404 = vadd.f32 %v248, %v372
    %v405 = vadd.f32 %v250, %v373
    %v406 = vadd.f32 %v252, %v374
    %v407 = vadd.f32 %v254, %v375
    %v408 = vadd.f32 %v258, %v376
    %v409 = vadd.f32 %v260, %v377
    %v410 = vadd.f32 %v262, %v378
    %v411 = vadd.f32 %v264, %v379
    %v412 = vadd.f32 %v268, %v380
    %v413 = vadd.f32 %v270, %v381
    %v414 = vadd.f32 %v272, %v382
    %v415 = vadd.f32 %v274, %v383
    %v416 = vadd.f32 %v278, %v384
    %v417 = vadd.f32 %v280, %v385
    %v418 = vadd.f32 %v282, %v386
    %v419 = vadd.f32 %v284, %v387
    %v420 = vadd.f32 %v288, %v388
    %v421 = vadd.f32 %v290, %v389
    %v422 = vadd.f32 %v292, %v390
    %v423 = vadd.f32 %v294, %v391
    %v424 = vmul.f32 %v392, 0.7978846
    %v425 = vmul.f32 %v393, 0.7978846
    %v426 = vmul.f32 %v394, 0.7978846
    %v427 = vmul.f32 %v395, 0.7978846
    %v428 = vmul.f32 %v396, 0.7978846
    %v429 = vmul.f32 %v397, 0.7978846
    %v430 = vmul.f32 %v398, 0.7978846
    %v431 = vmul.f32 %v399, 0.7978846
    %v432 = vmul.f32 %v400, 0.7978846
    %v433 = vmul.f32 %v401, 0.7978846
    %v434 = vmul.f32 %v402, 0.7978846
    %v435 = vmul.f32 %v403, 0.7978846
    %v436 = vmul.f32 %v404, 0.7978846
    %v437 = vmul.f32 %v405, 0.7978846
    %v438 = vmul.f32 %v406, 0.7978846
    %v439 = vmul.f32 %v407, 0.7978846
    %v440 = vmul.f32 %v408, 0.7978846
    %v441 = vmul.f32 %v409, 0.7978846
    %v442 = vmul.f32 %v410, 0.7978846
    %v443 = vmul.f32 %v411, 0.7978846
    %v444 = vmul.f32 %v412, 0.7978846
    %v445 = vmul.f32 %v413, 0.7978846
    %v446 = vmul.f32 %v414, 0.7978846
    %v447 = vmul.f32 %v415, 0.7978846
    %v448 = vmul.f32 %v416, 0.7978846
    %v449 = vmul.f32 %v417, 0.7978846
    %v450 = vmul.f32 %v418, 0.7978846
    %v451 = vmul.f32 %v419, 0.7978846
    %v452 = vmul.f32 %v420, 0.7978846
    %v453 = vmul.f32 %v421, 0.7978846
    %v454 = vmul.f32 %v422, 0.7978846
    %v455 = vmul.f32 %v423, 0.7978846
    %v456 = vtanh.pop %v424
    %v457 = vtanh.pop %v425
    %v458 = vtanh.pop %v426
    %v459 = vtanh.pop %v427
    %v460 = vtanh.pop %v428
    %v461 = vtanh.pop %v429
    %v462 = vtanh.pop %v430
    %v463 = vtanh.pop %v431
    %v464 = vtanh.pop %v432
    %v465 = vtanh.pop %v433
    %v466 = vtanh.pop %v434
    %v467 = vtanh.pop %v435
    %v468 = vtanh.pop %v436
    %v469 = vtanh.pop %v437
    %v470 = vtanh.pop %v438
    %v471 = vtanh.pop %v439
    %v472 = vtanh.pop %v440
    %v473 = vtanh.pop %v441
    %v474 = vtanh.pop %v442
    %v475 = vtanh.pop %v443
    %v476 = vtanh.pop %v444
    %v477 = vtanh.pop %v445
    %v478 = vtanh.pop %v446
    %v479 = vtanh.pop %v447
    %v480 = vtanh.pop %v448
    %v481 = vtanh.pop %v449
    %v482 = vtanh.pop %v450
    %v483 = vtanh.pop %v451
    %v484 = vtanh.pop %v452
    %v485 = vtanh.pop %v453
    %v486 = vtanh.pop %v454
    %v487 = vtanh.pop %v455
    %v488 = vadd.f32 %v456, 1.0
    %v489 = vadd.f32 %v457, 1.0
    %v490 = vadd.f32 %v458, 1.0
    %v491 = vadd.f32 %v459, 1.0
    %v492 = vadd.f32 %v460, 1.0
    %v493 = vadd.f32 %v461, 1.0
    %v494 = vadd.f32 %v462, 1.0
    %v495 = vadd.f32 %v463, 1.0
    %v496 = vadd.f32 %v464, 1.0
    %v497 = vadd.f32 %v465, 1.0
    %v498 = vadd.f32 %v466, 1.0
    %v499 = vadd.f32 %v467, 1.0
    %v500 = vadd.f32 %v468, 1.0
    %v501 = vadd.f32 %v469, 1.0
    %v502 = vadd.f32 %v470, 1.0
    %v503 = vadd.f32 %v471, 1.0
    %v504 = vadd.f32 %v472, 1.0
    %v505 = vadd.f32 %v473, 1.0
    %v506 = vadd.f32 %v474, 1.0
    %v507 = vadd.f32 %v475, 1.0
    %v508 = vadd.f32 %v476, 1.0
    %v509 = vadd.f32 %v477, 1.0
    %v510 = vadd.f32 %v478, 1.0
    %v511 = vadd.f32 %v479, 1.0
    %v512 = vadd.f32 %v480, 1.0
    %v513 = vadd.f32 %v481, 1.0
    %v514 = vadd.f32 %v482, 1.0
    %v515 = vadd.f32 %v483, 1.0
    %v516 = vadd.f32 %v484, 1.0
    %v517 = vadd.f32 %v485, 1.0
    %v518 = vadd.f32 %v486, 1.0
    %v519 = vadd.f32 %v487, 1.0
    %v520 = vmul.f32 %v488, 0.5
    %v521 = vmul.f32 %v489, 0.5
    %v522 = vmul.f32 %v490, 0.5
    %v523 = vmul.f32 %v491, 0.5
    %v524 = vmul.f32 %v492, 0.5
    %v525 = vmul.f32 %v493, 0.5
    %v526 = vmul.f32 %v494, 0.5
    %v527 = vmul.f32 %v495, 0.5
    %v528 = vmul.f32 %v496, 0.5
    %v529 = vmul.f32 %v497, 0.5
    %v530 = vmul.f32 %v498, 0.5
    %v531 = vmul.f32 %v499, 0.5
    %v532 = vmul.f32 %v500, 0.5
    %v533 = vmul.f32 %v501, 0.5
    %v534 = vmul.f32 %v502, 0.5
    %v535 = vmul.f32 %v503, 0.5
    %v536 = vmul.f32 %v504, 0.5
    %v537 = vmul.f32 %v505, 0.5
    %v538 = vmul.f32 %v506, 0.5
    %v539 = vmul.f32 %v507, 0.5
    %v540 = vmul.f32 %v508, 0.5
    %v541 = vmul.f32 %v509, 0.5
    %v542 = vmul.f32 %v510, 0.5
    %v543 = vmul.f32 %v511, 0.5
    %v544 = vmul.f32 %v512, 0.5
    %v545 = vmul.f32 %v513, 0.5
    %v546 = vmul.f32 %v514, 0.5
    %v547 = vmul.f32 %v515, 0.5
    %v548 = vmul.f32 %v516, 0.5
    %v549 = vmul.f32 %v517, 0.5
    %v550 = vmul.f32 %v518, 0.5
    %v551 = vmul.f32 %v519, 0.5
    %v552 = vmul.f32 %v218, %v520
    %v553 = vmul.f32 %v220, %v521
    %v554 = vmul.f32 %v222, %v522
    %v555 = vmul.f32 %v224, %v523
    %v556 = vmul.f32 %v228, %v524
    %v557 = vmul.f32 %v230, %v525
    %v558 = vmul.f32 %v232, %v526
    %v559 = vmul.f32 %v234, %v527
    %v560 = vmul.f32 %v238, %v528
    %v561 = vmul.f32 %v240, %v529
    %v562 = vmul.f32 %v242, %v530
    %v563 = vmul.f32 %v244, %v531
    %v564 = vmul.f32 %v248, %v532
    %v565 = vmul.f32 %v250, %v533
    %v566 = vmul.f32 %v252, %v534
    %v567 = vmul.f32 %v254, %v535
    %v568 = vmul.f32 %v258, %v536
    %v569 = vmul.f32 %v260, %v537
    %v570 = vmul.f32 %v262, %v538
    %v571 = vmul.f32 %v264, %v539
    %v572 = vmul.f32 %v268, %v540
    %v573 = vmul.f32 %v270, %v541
    %v574 = vmul.f32 %v272, %v542
    %v575 = vmul.f32 %v274, %v543
    %v576 = vmul.f32 %v278, %v544
    %v577 = vmul.f32 %v280, %v545
    %v578 = vmul.f32 %v282, %v546
    %v579 = vmul.f32 %v284, %v547
    %v580 = vmul.f32 %v288, %v548
    %v581 = vmul.f32 %v290, %v549
    %v582 = vmul.f32 %v292, %v550
    %v583 = vmul.f32 %v294, %v551
    %v584 = vld [vmem:[%s3] sm:$0x1]
    %v585 = vpack.c.bf16 %v584, %v584
    %v586 = vpack.c.bf16 %v554, %v552
    %v587 = vpack.c.bf16 %v555, %v553
    %v588 = vpack.c.bf16 %v558, %v556
    %v589 = vpack.c.bf16 %v559, %v557
    %v590 = vpack.c.bf16 %v562, %v560
    %v591 = vpack.c.bf16 %v563, %v561
    %v592 = vpack.c.bf16 %v566, %v564
    %v593 = vpack.c.bf16 %v567, %v565
    %v594 = vpack.c.bf16 %v570, %v568
    %v595 = vpack.c.bf16 %v571, %v569
    %v596 = vpack.c.bf16 %v574, %v572
    %v597 = vpack.c.bf16 %v575, %v573
    %v598 = vpack.c.bf16 %v578, %v576
    %v599 = vpack.c.bf16 %v579, %v577
    %v600 = vpack.c.bf16 %v582, %v580
    %v601 = vpack.c.bf16 %v583, %v581
    %v602 = vld [vmem:[#allocation2] sm:$0x1]
    %604 = vset.pattern.permute.xlu0 0
    %605 = vperm.xlu0 %604, %v602
    %v606 = vpop.permute.xlu0 %605
    %v608 = vlaneseq
    %v609 = vshrl.u32 %v608, 7
    %v610 = vsub.s32 0, %v609
    %v611 = vrot.slane %v606, %v610
    %612 = vmatprep.subr.bf16.mxu0 %v587
    %613 = vmatpush1.bf16.msra.mxu0 %v586
    %614 = vmatprep.subr.bf16.mxu0 %v589
    %615 = vmatpush1.bf16.msra.mxu0 %v588
    %616 = vmatprep.subr.bf16.mxu0 %v591
    %617 = vmatpush1.bf16.msra.mxu0 %v590
    %618 = vmatprep.subr.bf16.mxu0 %v593
    %619 = vmatpush1.bf16.msra.mxu0 %v592
    %620 = vmatprep.subr.bf16.mxu0 %v595
    %621 = vmatpush1.bf16.msra.mxu0 %v594
    %622 = vmatprep.subr.bf16.mxu0 %v597
    %623 = vmatpush1.bf16.msra.mxu0 %v596
    %624 = vmatprep.subr.bf16.mxu0 %v599
    %625 = vmatpush1.bf16.msra.mxu0 %v598
    %626 = vmatprep.subr.bf16.mxu0 %v601
    %627 = vmatpush1.bf16.msra.mxu0 %v600
    %628 = vmatprep.subr.bf16.mxu0 0
    %629 = vmatpush1.bf16.msra.mxu0 0
    %630 = vmatprep.subr.bf16.mxu0 0
    %631 = vmatpush1.bf16.msra.mxu0 0
    %632 = vmatprep.subr.bf16.mxu0 0
    %633 = vmatpush1.bf16.msra.mxu0 0
    %634 = vmatprep.subr.bf16.mxu0 0
    %635 = vmatpush1.bf16.msra.mxu0 0
    %636 = vmatprep.subr.bf16.mxu0 0
    %637 = vmatpush1.bf16.msra.mxu0 0
    %638 = vmatprep.subr.bf16.mxu0 0
    %639 = vmatpush1.bf16.msra.mxu0 0
    %640 = vmatprep.subr.bf16.mxu0 0
    %641 = vmatpush1.bf16.msra.mxu0 0
    %642 = vmatprep.subr.bf16.mxu0 0
    %643 = vmatpush1.bf16.msra.mxu0 0
    %644 = vmatprep.mubr.bf16.mxu0 0
    %645 = vmatmul.mubr.bf16.gmra.mrb[0].mxu0 %v585
    %v646 = vpop.f32.mrb[0].mxu0
    %v647 = vadd.f32 %v611, %v646
    %v648 = vpop.f32.mrb[0].mxu0
    %v649 = vadd.f32 %v611, %v648
    %v650 = vpop.f32.mrb[0].mxu0
    %v651 = vpop.f32.mrb[0].mxu0
    %652 = vdwg.mxu0
    %v653 = vxor.u32 %v647, 2147483648
    %v654 = vxor.u32 %v649, 2147483648
    %v655 = vmul.f32 %v653, 1.442695
    %v656 = vpow.pop %v655
    %v657 = vmul.f32 %v654, 1.442695
    %v658 = vpow.pop %v657
    %v659 = vadd.f32 %v656, 1.0
    %v660 = vadd.f32 %v658, 1.0
    %v661 = vrcp.pop %v659
    %v662 = vmul.f32 1.0, %v661
    %v663 = vrcp.pop %v660
    %v664 = vmul.f32 1.0, %v663
    %v667 = vcombine.low %v662, %v664
    %v669 = vunpack.c.l.s4 1966171168
    %v670 = vunpack.c.0.s8 %v669
    %v671 = vlaneseq
    %v672 = vshrl.u32 %v671, 7
    %v673 = vsub.s32 %v670, %v672
    %v674 = vrot.slane %v667, %v673
    %v676 = vunpack.c.l.s4 1966171168
    %v677 = vunpack.c.0.s8 %v676
    %v678 = vlaneseq
    %v679 = vshrl.u32 %v678, 7
    %v680 = vsub.s32 %v677, %v679
    %v681 = vrot.slane %v674, %v680
    %v683 = vlaneseq
    %vm684 = vcmp.ge.s32.totalorder %v683, 0
    %vm685 = vcmp.lt.s32.totalorder %v683, 256
    %vm686 = vmand %vm684, %vm685
    %687 = vst.msk [vmem:[#allocation3] sm:$0x3] %vm686, %v681
    // Predicated region
    $region22: #{_lambda_.11} parent=1 // pred_check
      _
    $region23: #{_lambda_.11} parent=1 // pred_check_branch
      %689 = sbr.rel (0) target = $region25
    $region24: #{_lambda_.11} parent=1 // pred_region
      %s691 = ssub.s32 32, 32
      %692 = vsyncadd [#allocation4], %s691
      %s694 = sshll.u32 [#allocation3], 4
      %s695 = int_to_ptr.vmem [resolvable:$true] %s694
      %697 = dma.vmem_to_hbm [thread:$0]  %s695, 32, %s5, [#allocation4]
    $region25: #{_lambda_.11} parent=1 // pred_fallthru
      _
    // Predicated region
    $region26: #{_lambda_.11} parent=1 // pred_check
      _
    $region27: #{_lambda_.11} parent=1 // pred_check_branch
      %699 = sbr.rel (0) target = $region29
    $region28: #{_lambda_.11} parent=1 // pred_region
      %700 = dma.done [#allocation4], 32
    $region29: #{_lambda_.11} parent=1 // pred_fallthru
      _
    %701 = vsyncpa [#allocation4], 1

</llo_original>
